<compile_context>
chip_gen: v6e
topology: v6e:2x2x1
jax: 0.10.0
libtpu: 0.0.40
codegen_flags: <defaults>
</compile_context>

<pallas_src>
import functools
import math

import jax
import jax.numpy as jnp
from jax.experimental import pallas as pl
from jax.experimental.pallas import tpu as pltpu


CFG = dict(
    vocab_size=100, max_pos=64, type_vocab=2,
    hidden=32, heads=2, layers=2, ffn=64, num_classes=3, eps=1e-12,
)

C_PAD = 128  # lane-dense logits slab width


# ------------------------------------------------------------------ kernel --

def _bert_layer_kernel(
    x_ref, mask_ref, emb_g_ref, emb_b_ref,
    wqkv_ref, bqkv_ref, wo_ref, bo_ref,
    ln1_g_ref, ln1_b_ref, w1_ref, b1_ref, w2_ref, b2_ref,
    ln2_g_ref, ln2_b_ref,
    pool_w_ref, pool_b_ref, cls_w_ref, cls_b_ref,
    logits_ref, h_ref, *, B, S, H, nh, eps):
    """One encoder layer per grid step; prologue/epilogue gated by pl.when."""
    l = pl.program_id(0)
    L = pl.num_programs(0)
    dh = H // nh
    scale = 1.0 / math.sqrt(dh)
    bf = jnp.bfloat16

    def layernorm(x, g, b):                      # f32 statistics
        mu = jnp.mean(x, axis=-1, keepdims=True)
        var = jnp.mean((x - mu) * (x - mu), axis=-1, keepdims=True)
        return (x - mu) * jax.lax.rsqrt(var + eps) * g + b

    def gelu(x):                                 # exact erf GELU (HF default)
        return 0.5 * x * (1.0 + jax.lax.erf(x * (1.0 / math.sqrt(2.0))))

    # ---- prologue (step 0): embedding LayerNorm into resident activations
    @pl.when(l == 0)
    def _():
        h_ref[...] = layernorm(x_ref[...], emb_g_ref[...], emb_b_ref[...])

    h = h_ref[...]                               # (B*S, H) f32, VMEM-resident
    h_bf = h.astype(bf)
    mask = mask_ref[...]                         # (B, S, S) f32 additive bias

    # ---- fused QKV projection: bf16 MXU operands, f32 accumulate
    qkv = jnp.dot(h_bf, wqkv_ref[0],
                  preferred_element_type=jnp.float32) + bqkv_ref[0]  # (B*S, 3H)

    # ---- per-head attention (softmax math in f32)
    ctx_heads = []
    for hd in range(nh):                         # static unroll
        q = qkv[:, hd * dh:(hd + 1) * dh].reshape(B, S, dh).astype(bf)
        k = qkv[:, H + hd * dh:H + (hd + 1) * dh].reshape(B, S, dh).astype(bf)
        v = qkv[:, 2 * H + hd * dh:2 * H + (hd + 1) * dh].reshape(B, S, dh).astype(bf)

        s = jnp.einsum("bqd,bkd->bqk", q, k,
                       preferred_element_type=jnp.float32) * scale
        s = s + mask                             # same-shape add, no broadcast
        s = s - jnp.max(s, axis=-1, keepdims=True)
        p = jnp.exp(s)
        p = p * pl.reciprocal(jnp.sum(p, axis=-1, keepdims=True), approx=True)
        ctx = jnp.einsum("bqk,bkd->bqd", p.astype(bf), v,
                         preferred_element_type=jnp.float32)
        ctx_heads.append(ctx.reshape(B * S, dh))
    ctx = jnp.concatenate(ctx_heads, axis=-1)    # (B*S, H)

    # ---- attention output projection + residual LN
    attn_out = jnp.dot(ctx.astype(bf), wo_ref[0],
                       preferred_element_type=jnp.float32) + bo_ref[0]
    h1 = layernorm(attn_out + h, ln1_g_ref[0], ln1_b_ref[0])

    # ---- FFN (GELU in f32) + residual LN
    ff = jnp.dot(h1.astype(bf), w1_ref[0],
                 preferred_element_type=jnp.float32) + b1_ref[0]
    ff = gelu(ff)
    ff = jnp.dot(ff.astype(bf), w2_ref[0],
                 preferred_element_type=jnp.float32) + b2_ref[0]
    h2 = layernorm(ff + h1, ln2_g_ref[0], ln2_b_ref[0])
    h_ref[...] = h2                              # carry to next layer step

    # ---- epilogue (last step): pooler (first token, dense+tanh) + classifier
    @pl.when(l == L - 1)
    def _():
        pooled_in = h2.reshape(B, S, H)[:, 0:1, :].reshape(B, H)   # first tokens
        pooled = jnp.tanh(
            jnp.dot(pooled_in.astype(bf), pool_w_ref[...],
                    preferred_element_type=jnp.float32) + pool_b_ref[...])
        # TODO(synk): nn.Dropout(p=0.2) treated as inference-mode identity.
        logits = jnp.dot(pooled.astype(bf), cls_w_ref[...],
                         preferred_element_type=jnp.float32) + cls_b_ref[...]
        logits_ref[...] = logits.astype(logits_ref.dtype)          # (B, 128)


# ----------------------------------------------------------------- wrapper --

def _resident_spec(shape):
    """Loaded once: block index constant across the layer grid axis."""
    zeros = (0,) * len(shape)
    return pl.BlockSpec(shape, lambda l, _z=zeros: _z)


def _per_layer_spec(shape):
    """Stacked (L, ...) weight: one layer slab per grid step (double-buffered)."""
    blk = (1,) + tuple(shape[1:])
    tail = (0,) * (len(shape) - 1)
    return pl.BlockSpec(blk, lambda l, _t=tail: (l,) + _t)


def bert_classifier_forward(params, input_ids, token_type_ids, attention_mask, cfg):
    B, S = input_ids.shape
    H, nh, L = cfg["hidden"], cfg["heads"], cfg["layers"]
    C = cfg["num_classes"]
    eps = cfg["eps"]
    bf = jnp.bfloat16

    # embedding-table gathers are XLA glue; everything else runs in the kernel
    pos_ids = jnp.arange(S, dtype=jnp.int32)
    emb = (params["word_emb"][input_ids]
           + params["pos_emb"][pos_ids][None, :, :]
           + params["type_emb"][token_type_ids])
    x = emb.reshape(B * S, H).astype(jnp.float32)

    # additive attention bias materialized ONCE as (B, S, S); kernel never
    # re-broadcasts it per head / per layer
    mask_bias = ((1.0 - attention_mask.astype(jnp.float32)) * -1e9)[:, None, :]
    mask_bias = jnp.broadcast_to(mask_bias, (B, S, S))

    # classifier padded to a 128-lane slab for an unmasked, lane-dense store
    cls_w_pad = (jnp.zeros((H, C_PAD), jnp.float32)
                 .at[:, :C].set(params["cls_w"])).astype(bf)
    cls_b_pad = (jnp.zeros((1, C_PAD), jnp.float32)
                 .at[:, :C].set(params["cls_b"].reshape(1, C)))

    stk = params["layers"]
    inputs = [
        x, mask_bias,
        params["emb_ln_g"].reshape(1, H), params["emb_ln_b"].reshape(1, H),
        stk["wqkv"].astype(bf), stk["bqkv"],
        stk["wo"].astype(bf), stk["bo"],
        stk["ln1_g"], stk["ln1_b"],
        stk["w1"].astype(bf), stk["b1"],
        stk["w2"].astype(bf), stk["b2"],
        stk["ln2_g"], stk["ln2_b"],
        params["pool_w"].astype(bf), params["pool_b"].reshape(1, H),
        cls_w_pad, cls_b_pad,
    ]

    # first 4 + last 4 inputs are resident (constant block index);
    # the stacked per-layer weights stream one layer slab per grid step
    in_specs = (
        [_resident_spec(a.shape) for a in inputs[:4]]
        + [_per_layer_spec(a.shape) for a in inputs[4:16]]
        + [_resident_spec(a.shape) for a in inputs[16:]]
    )

    kernel = functools.partial(_bert_layer_kernel,
                               B=B, S=S, H=H, nh=nh, eps=eps)
    logits_pad = pl.pallas_call(
        kernel,
        grid=(L,),                                     # layer-streaming axis
        in_specs=in_specs,
        out_specs=pl.BlockSpec((B, C_PAD), lambda l: (0, 0)),
        out_shape=jax.ShapeDtypeStruct((B, C_PAD), jnp.float32),
        scratch_shapes=[pltpu.VMEM((B * S, H), jnp.float32)],  # resident acts
        compiler_params=pltpu.CompilerParams(
            # layer axis is a sequential dependency chain; at real shapes a
            # token-tile axis would be added and marked "parallel" for v7x
            dimension_semantics=("arbitrary",),
            vmem_limit_bytes=32 * 1024 * 1024,  # > v5e's 16 MiB scoped default
        ),
    )(*inputs)
    return logits_pad[:, :C]


# ------------------------------------------------------------------ params --

def init_params(key, cfg):
    H, F = cfg["hidden"], cfg["ffn"]
    L, C = cfg["layers"], cfg["num_classes"]
    keys = iter(jax.random.split(key, 64))
    n = lambda shape: (0.02 * jax.random.normal(next(keys), shape)).astype(jnp.float32)
    z = lambda shape: jnp.zeros(shape, jnp.float32)
    o = lambda shape: jnp.ones(shape, jnp.float32)

    return {
        "word_emb": n((cfg["vocab_size"], H)),
        "pos_emb": n((cfg["max_pos"], H)),
        "type_emb": n((cfg["type_vocab"], H)),
        "emb_ln_g": o((H,)), "emb_ln_b": z((H,)),
        "pool_w": n((H, H)), "pool_b": z((H,)),
        "cls_w": n((H, C)), "cls_b": z((C,)),
        # per-layer weights stacked along a leading layer axis
        "layers": {
            "wqkv": n((L, H, 3 * H)), "bqkv": z((L, 1, 3 * H)),
            "wo": n((L, H, H)), "bo": z((L, 1, H)),
            "ln1_g": o((L, 1, H)), "ln1_b": z((L, 1, H)),
            "w1": n((L, H, F)), "b1": z((L, 1, F)),
            "w2": n((L, F, H)), "b2": z((L, 1, H)),
            "ln2_g": o((L, 1, H)), "ln2_b": z((L, 1, H)),
        },
    }


# -------------------------------------------------------------------- main --

if __name__ == "__main__":
    key = jax.random.PRNGKey(0)
    k_par, k_ids, k_typ = jax.random.split(key, 3)

    B, S = 2, 8
    params = init_params(k_par, CFG)

    input_ids = jax.random.randint(k_ids, (B, S), 0, CFG["vocab_size"], dtype=jnp.int32)
    token_type_ids = jax.random.randint(k_typ, (B, S), 0, CFG["type_vocab"], dtype=jnp.int32)
    attention_mask = jnp.array(
        [[1, 1, 1, 1, 1, 1, 1, 1],
         [1, 1, 1, 1, 1, 0, 0, 0]], dtype=jnp.int32)

    fwd = jax.jit(functools.partial(bert_classifier_forward, cfg=CFG))
    logits = fwd(params, input_ids, token_type_ids, attention_mask)
    jax.block_until_ready(logits)

    assert logits.shape == (B, CFG["num_classes"])
    assert bool(jnp.all(jnp.isfinite(logits)))
    print("KERNEL_OK")
</pallas_src>

<mosaic_0001>
module attributes {stable_mosaic.version = 11 : i64} {
  func.func @_bert_layer_kernel(%arg0: i32, %arg1: memref<16x32xf32, #tpu.memory_space<vmem>>, %arg2: memref<2x8x8xf32, #tpu.memory_space<vmem>>, %arg3: memref<1x32xf32, #tpu.memory_space<vmem>>, %arg4: memref<1x32xf32, #tpu.memory_space<vmem>>, %arg5: memref<1x32x96xbf16, #tpu.memory_space<vmem>>, %arg6: memref<1x1x96xf32, #tpu.memory_space<vmem>>, %arg7: memref<1x32x32xbf16, #tpu.memory_space<vmem>>, %arg8: memref<1x1x32xf32, #tpu.memory_space<vmem>>, %arg9: memref<1x1x32xf32, #tpu.memory_space<vmem>>, %arg10: memref<1x1x32xf32, #tpu.memory_space<vmem>>, %arg11: memref<1x32x64xbf16, #tpu.memory_space<vmem>>, %arg12: memref<1x1x64xf32, #tpu.memory_space<vmem>>, %arg13: memref<1x64x32xbf16, #tpu.memory_space<vmem>>, %arg14: memref<1x1x32xf32, #tpu.memory_space<vmem>>, %arg15: memref<1x1x32xf32, #tpu.memory_space<vmem>>, %arg16: memref<1x1x32xf32, #tpu.memory_space<vmem>>, %arg17: memref<32x32xbf16, #tpu.memory_space<vmem>>, %arg18: memref<1x32xf32, #tpu.memory_space<vmem>>, %arg19: memref<32x128xbf16, #tpu.memory_space<vmem>>, %arg20: memref<1x128xf32, #tpu.memory_space<vmem>>, %arg21: memref<2x128xf32, #tpu.memory_space<vmem>>, %arg22: memref<16x32xf32, #tpu.memory_space<vmem>>) attributes {dimension_semantics = [#tpu.dimension_semantics<arbitrary>], iteration_bounds = array<i64: 2>, scalar_prefetch = 0 : i64, scratch_operands = 1 : i64, tpu.core_type = #tpu.core_type<tc>, window_params = [{pipeline_mode = #tpu.pipeline_mode<synchronous>, transform_indices = @transform_0, window_bounds = array<i64: 16, 32>}, {pipeline_mode = #tpu.pipeline_mode<synchronous>, transform_indices = @transform_1, window_bounds = array<i64: 2, 8, 8>}, {pipeline_mode = #tpu.pipeline_mode<synchronous>, transform_indices = @transform_2, window_bounds = array<i64: 1, 32>}, {pipeline_mode = #tpu.pipeline_mode<synchronous>, transform_indices = @transform_3, window_bounds = array<i64: 1, 32>}, {transform_indices = @transform_4, window_bounds = array<i64: 1, 32, 96>}, {transform_indices = @transform_5, window_bounds = array<i64: 1, 1, 96>}, {transform_indices = @transform_6, window_bounds = array<i64: 1, 32, 32>}, {transform_indices = @transform_7, window_bounds = array<i64: 1, 1, 32>}, {transform_indices = @transform_8, window_bounds = array<i64: 1, 1, 32>}, {transform_indices = @transform_9, window_bounds = array<i64: 1, 1, 32>}, {transform_indices = @transform_10, window_bounds = array<i64: 1, 32, 64>}, {transform_indices = @transform_11, window_bounds = array<i64: 1, 1, 64>}, {transform_indices = @transform_12, window_bounds = array<i64: 1, 64, 32>}, {transform_indices = @transform_13, window_bounds = array<i64: 1, 1, 32>}, {transform_indices = @transform_14, window_bounds = array<i64: 1, 1, 32>}, {transform_indices = @transform_15, window_bounds = array<i64: 1, 1, 32>}, {pipeline_mode = #tpu.pipeline_mode<synchronous>, transform_indices = @transform_16, window_bounds = array<i64: 32, 32>}, {pipeline_mode = #tpu.pipeline_mode<synchronous>, transform_indices = @transform_17, window_bounds = array<i64: 1, 32>}, {pipeline_mode = #tpu.pipeline_mode<synchronous>, transform_indices = @transform_18, window_bounds = array<i64: 32, 128>}, {pipeline_mode = #tpu.pipeline_mode<synchronous>, transform_indices = @transform_19, window_bounds = array<i64: 1, 128>}, {pipeline_mode = #tpu.pipeline_mode<synchronous>, transform_indices = @transform_20, window_bounds = array<i64: 2, 128>}]} {
    %c0_i32 = arith.constant 0 : i32
    %0 = arith.cmpi eq, %arg0, %c0_i32 : i32
    %1 = arith.extui %0 : i1 to i32
    %c0_i32_0 = arith.constant 0 : i32
    %2 = arith.cmpi ne, %1, %c0_i32_0 : i32
    scf.if %2 {
      %c0_70 = arith.constant 0 : index
      %c0_71 = arith.constant 0 : index
      %160 = vector.load %arg1[%c0_70, %c0_71] : memref<16x32xf32, #tpu.memory_space<vmem>>, vector<16x32xf32>
      %c0_72 = arith.constant 0 : index
      %c0_73 = arith.constant 0 : index
      %161 = vector.load %arg3[%c0_72, %c0_73] : memref<1x32xf32, #tpu.memory_space<vmem>>, vector<1x32xf32>
      %c0_74 = arith.constant 0 : index
      %c0_75 = arith.constant 0 : index
      %162 = vector.load %arg4[%c0_74, %c0_75] : memref<1x32xf32, #tpu.memory_space<vmem>>, vector<1x32xf32>
      %cst_76 = arith.constant dense<0.000000e+00> : vector<16xf32>
      %163 = vector.multi_reduction <add>, %160, %cst_76 [1] : vector<16x32xf32> to vector<16xf32>
      %164 = vector.shape_cast %163 : vector<16xf32> to vector<16x1xf32>
      %cst_77 = arith.constant 3.200000e+01 : f32
      %165 = vector.broadcast %cst_77 : f32 to vector<16x1xf32>
      %166 = arith.divf %164, %165 : vector<16x1xf32>
      %167 = vector.broadcast %166 : vector<16x1xf32> to vector<16x32xf32>
      %168 = arith.subf %160, %167 : vector<16x32xf32>
      %169 = vector.broadcast %166 : vector<16x1xf32> to vector<16x32xf32>
      %170 = arith.subf %160, %169 : vector<16x32xf32>
      %171 = arith.mulf %168, %170 : vector<16x32xf32>
      %cst_78 = arith.constant dense<0.000000e+00> : vector<16xf32>
      %172 = vector.multi_reduction <add>, %171, %cst_78 [1] : vector<16x32xf32> to vector<16xf32>
      %173 = vector.shape_cast %172 : vector<16xf32> to vector<16x1xf32>
      %cst_79 = arith.constant 3.200000e+01 : f32
      %174 = vector.broadcast %cst_79 : f32 to vector<16x1xf32>
      %175 = arith.divf %173, %174 : vector<16x1xf32>
      %176 = vector.broadcast %166 : vector<16x1xf32> to vector<16x32xf32>
      %177 = arith.subf %160, %176 : vector<16x32xf32>
      %cst_80 = arith.constant 9.99999996E-13 : f32
      %178 = vector.broadcast %cst_80 : f32 to vector<16x1xf32>
      %179 = arith.addf %175, %178 : vector<16x1xf32>
      %180 = math.rsqrt %179 : vector<16x1xf32>
      %181 = vector.broadcast %180 : vector<16x1xf32> to vector<16x32xf32>
      %182 = arith.mulf %177, %181 : vector<16x32xf32>
      %183 = vector.broadcast %161 : vector<1x32xf32> to vector<16x32xf32>
      %184 = arith.mulf %182, %183 : vector<16x32xf32>
      %185 = vector.broadcast %162 : vector<1x32xf32> to vector<16x32xf32>
      %186 = arith.addf %184, %185 : vector<16x32xf32>
      %c0_81 = arith.constant 0 : index
      %c0_82 = arith.constant 0 : index
      %187 = vector.load %arg22[%c0_81, %c0_82] : memref<16x32xf32, #tpu.memory_space<vmem>>, vector<16x32xf32>
      tpu.vector_store %arg22[%c0_81, %c0_82], %186 {strides = array<i32>} : memref<16x32xf32, #tpu.memory_space<vmem>>, vector<16x32xf32>,
    } else {
    }
    %c0 = arith.constant 0 : index
    %c0_1 = arith.constant 0 : index
    %3 = vector.load %arg22[%c0, %c0_1] : memref<16x32xf32, #tpu.memory_space<vmem>>, vector<16x32xf32>
    %4 = arith.truncf %3 : vector<16x32xf32> to vector<16x32xbf16>
    %c0_2 = arith.constant 0 : index
    %c0_3 = arith.constant 0 : index
    %c0_4 = arith.constant 0 : index
    %5 = vector.load %arg2[%c0_2, %c0_3, %c0_4] : memref<2x8x8xf32, #tpu.memory_space<vmem>>, vector<2x8x8xf32>
    %c0_5 = arith.constant 0 : index
    %c0_6 = arith.constant 0 : index
    %c0_7 = arith.constant 0 : index
    %6 = vector.load %arg5[%c0_5, %c0_6, %c0_7] : memref<1x32x96xbf16, #tpu.memory_space<vmem>>, vector<1x32x96xbf16>
    %7 = vector.shape_cast %6 : vector<1x32x96xbf16> to vector<32x96xbf16>
    %cst = arith.constant dense<0.000000e+00> : vector<16x96xf32>
    %8 = tpu.matmul %4, %7, %cst {dimension_numbers = #tpu.dot_dimension_numbers<[1], [0], [0], [1], [0, 0, 1, 1], [], []>} : vector<16x32xbf16>, vector<32x96xbf16>, vector<16x96xf32> -> vector<16x96xf32>
    %c0_8 = arith.constant 0 : index
    %c0_9 = arith.constant 0 : index
    %c0_10 = arith.constant 0 : index
    %9 = vector.load %arg6[%c0_8, %c0_9, %c0_10] : memref<1x1x96xf32, #tpu.memory_space<vmem>>, vector<1x1x96xf32>
    %10 = vector.shape_cast %9 : vector<1x1x96xf32> to vector<1x96xf32>
    %11 = vector.broadcast %10 : vector<1x96xf32> to vector<16x96xf32>
    %12 = arith.addf %8, %11 : vector<16x96xf32>
    %13 = vector.extract_strided_slice %12 {offsets = [0, 0], sizes = [16, 16], strides = [1, 1]} : vector<16x96xf32> to vector<16x16xf32>
    %14 = vector.shape_cast %13 : vector<16x16xf32> to vector<2x8x16xf32>
    %15 = arith.truncf %14 : vector<2x8x16xf32> to vector<2x8x16xbf16>
    %16 = vector.extract_strided_slice %12 {offsets = [0, 32], sizes = [16, 16], strides = [1, 1]} : vector<16x96xf32> to vector<16x16xf32>
    %17 = vector.shape_cast %16 : vector<16x16xf32> to vector<2x8x16xf32>
    %18 = arith.truncf %17 : vector<2x8x16xf32> to vector<2x8x16xbf16>
    %19 = vector.extract_strided_slice %12 {offsets = [0, 64], sizes = [16, 16], strides = [1, 1]} : vector<16x96xf32> to vector<16x16xf32>
    %20 = vector.shape_cast %19 : vector<16x16xf32> to vector<2x8x16xf32>
    %21 = arith.truncf %20 : vector<2x8x16xf32> to vector<2x8x16xbf16>
    "tpu.trace_start"() <{level = 10 : i32, message = "bqd,bkd->bqk"}> : () -> ()
    %cst_11 = arith.constant dense<0.000000e+00> : vector<2x8x8xf32>
    %22 = tpu.matmul %15, %18, %cst_11 {dimension_numbers = #tpu.dot_dimension_numbers<[2], [2], [1], [1], [0, 0, 0, 1, 1, 1], [0], [0]>} : vector<2x8x16xbf16>, vector<2x8x16xbf16>, vector<2x8x8xf32> -> vector<2x8x8xf32>
    "tpu.trace_stop"() : () -> ()
    %cst_12 = arith.constant 2.500000e-01 : f32
    %23 = vector.broadcast %cst_12 : f32 to vector<2x8x8xf32>
    %24 = arith.mulf %22, %23 : vector<2x8x8xf32>
    %25 = arith.addf %24, %5 : vector<2x8x8xf32>
    %cst_13 = arith.constant dense<0xFF800000> : vector<2x8xf32>
    %26 = vector.multi_reduction <maximumf>, %25, %cst_13 [2] : vector<2x8x8xf32> to vector<2x8xf32>
    %27 = vector.shape_cast %26 : vector<2x8xf32> to vector<2x8x1xf32>
    %28 = vector.broadcast %27 : vector<2x8x1xf32> to vector<2x8x8xf32>
    %29 = arith.subf %25, %28 : vector<2x8x8xf32>
    %30 = math.exp %29 : vector<2x8x8xf32>
    %cst_14 = arith.constant dense<0.000000e+00> : vector<2x8xf32>
    %31 = vector.multi_reduction <add>, %30, %cst_14 [2] : vector<2x8x8xf32> to vector<2x8xf32>
    %32 = vector.shape_cast %31 : vector<2x8xf32> to vector<2x8x1xf32>
    %33 = tpu.reciprocal %32 {approx = true} : vector<2x8x1xf32> -> vector<2x8x1xf32>
    %34 = vector.broadcast %33 : vector<2x8x1xf32> to vector<2x8x8xf32>
    %35 = arith.mulf %30, %34 : vector<2x8x8xf32>
    %36 = arith.truncf %35 : vector<2x8x8xf32> to vector<2x8x8xbf16>
    "tpu.trace_start"() <{level = 10 : i32, message = "bqk,bkd->bqd"}> : () -> ()
    %cst_15 = arith.constant dense<0.000000e+00> : vector<2x8x16xf32>
    %37 = tpu.matmul %36, %21, %cst_15 {dimension_numbers = #tpu.dot_dimension_numbers<[2], [1], [1], [2], [0, 0, 0, 1, 1, 2], [0], [0]>} : vector<2x8x8xbf16>, vector<2x8x16xbf16>, vector<2x8x16xf32> -> vector<2x8x16xf32>
    "tpu.trace_stop"() : () -> ()
    %38 = vector.shape_cast %37 : vector<2x8x16xf32> to vector<16x16xf32>
    %39 = vector.extract_strided_slice %12 {offsets = [0, 16], sizes = [16, 16], strides = [1, 1]} : vector<16x96xf32> to vector<16x16xf32>
    %40 = vector.shape_cast %39 : vector<16x16xf32> to vector<2x8x16xf32>
    %41 = arith.truncf %40 : vector<2x8x16xf32> to vector<2x8x16xbf16>
    %42 = vector.extract_strided_slice %12 {offsets = [0, 48], sizes = [16, 16], strides = [1, 1]} : vector<16x96xf32> to vector<16x16xf32>
    %43 = vector.shape_cast %42 : vector<16x16xf32> to vector<2x8x16xf32>
    %44 = arith.truncf %43 : vector<2x8x16xf32> to vector<2x8x16xbf16>
    %45 = vector.extract_strided_slice %12 {offsets = [0, 80], sizes = [16, 16], strides = [1, 1]} : vector<16x96xf32> to vector<16x16xf32>
    %46 = vector.shape_cast %45 : vector<16x16xf32> to vector<2x8x16xf32>
    %47 = arith.truncf %46 : vector<2x8x16xf32> to vector<2x8x16xbf16>
    "tpu.trace_start"() <{level = 10 : i32, message = "bqd,bkd->bqk"}> : () -> ()
    %cst_16 = arith.constant dense<0.000000e+00> : vector<2x8x8xf32>
    %48 = tpu.matmul %41, %44, %cst_16 {dimension_numbers = #tpu.dot_dimension_numbers<[2], [2], [1], [1], [0, 0, 0, 1, 1, 1], [0], [0]>} : vector<2x8x16xbf16>, vector<2x8x16xbf16>, vector<2x8x8xf32> -> vector<2x8x8xf32>
    "tpu.trace_stop"() : () -> ()
    %cst_17 = arith.constant 2.500000e-01 : f32
    %49 = vector.broadcast %cst_17 : f32 to vector<2x8x8xf32>
    %50 = arith.mulf %48, %49 : vector<2x8x8xf32>
    %51 = arith.addf %50, %5 : vector<2x8x8xf32>
    %cst_18 = arith.constant dense<0xFF800000> : vector<2x8xf32>
    %52 = vector.multi_reduction <maximumf>, %51, %cst_18 [2] : vector<2x8x8xf32> to vector<2x8xf32>
    %53 = vector.shape_cast %52 : vector<2x8xf32> to vector<2x8x1xf32>
    %54 = vector.broadcast %53 : vector<2x8x1xf32> to vector<2x8x8xf32>
    %55 = arith.subf %51, %54 : vector<2x8x8xf32>
    %56 = math.exp %55 : vector<2x8x8xf32>
    %cst_19 = arith.constant dense<0.000000e+00> : vector<2x8xf32>
    %57 = vector.multi_reduction <add>, %56, %cst_19 [2] : vector<2x8x8xf32> to vector<2x8xf32>
    %58 = vector.shape_cast %57 : vector<2x8xf32> to vector<2x8x1xf32>
    %59 = tpu.reciprocal %58 {approx = true} : vector<2x8x1xf32> -> vector<2x8x1xf32>
    %60 = vector.broadcast %59 : vector<2x8x1xf32> to vector<2x8x8xf32>
    %61 = arith.mulf %56, %60 : vector<2x8x8xf32>
    %62 = arith.truncf %61 : vector<2x8x8xf32> to vector<2x8x8xbf16>
    "tpu.trace_start"() <{level = 10 : i32, message = "bqk,bkd->bqd"}> : () -> ()
    %cst_20 = arith.constant dense<0.000000e+00> : vector<2x8x16xf32>
    %63 = tpu.matmul %62, %47, %cst_20 {dimension_numbers = #tpu.dot_dimension_numbers<[2], [1], [1], [2], [0, 0, 0, 1, 1, 2], [0], [0]>} : vector<2x8x8xbf16>, vector<2x8x16xbf16>, vector<2x8x16xf32> -> vector<2x8x16xf32>
    "tpu.trace_stop"() : () -> ()
    %64 = vector.shape_cast %63 : vector<2x8x16xf32> to vector<16x16xf32>
    %65 = tpu.concatenate %38, %64 in 1 : vector<16x16xf32>, vector<16x16xf32> -> vector<16x32xf32>
    %66 = arith.truncf %65 : vector<16x32xf32> to vector<16x32xbf16>
    %c0_21 = arith.constant 0 : index
    %c0_22 = arith.constant 0 : index
    %c0_23 = arith.constant 0 : index
    %67 = vector.load %arg7[%c0_21, %c0_22, %c0_23] : memref<1x32x32xbf16, #tpu.memory_space<vmem>>, vector<1x32x32xbf16>
    %68 = vector.shape_cast %67 : vector<1x32x32xbf16> to vector<32x32xbf16>
    %cst_24 = arith.constant dense<0.000000e+00> : vector<16x32xf32>
    %69 = tpu.matmul %66, %68, %cst_24 {dimension_numbers = #tpu.dot_dimension_numbers<[1], [0], [0], [1], [0, 0, 1, 1], [], []>} : vector<16x32xbf16>, vector<32x32xbf16>, vector<16x32xf32> -> vector<16x32xf32>
    %c0_25 = arith.constant 0 : index
    %c0_26 = arith.constant 0 : index
    %c0_27 = arith.constant 0 : index
    %70 = vector.load %arg8[%c0_25, %c0_26, %c0_27] : memref<1x1x32xf32, #tpu.memory_space<vmem>>, vector<1x1x32xf32>
    %71 = vector.shape_cast %70 : vector<1x1x32xf32> to vector<1x32xf32>
    %72 = vector.broadcast %71 : vector<1x32xf32> to vector<16x32xf32>
    %73 = arith.addf %69, %72 : vector<16x32xf32>
    %74 = arith.addf %73, %3 : vector<16x32xf32>
    %c0_28 = arith.constant 0 : index
    %c0_29 = arith.constant 0 : index
    %c0_30 = arith.constant 0 : index
    %75 = vector.load %arg9[%c0_28, %c0_29, %c0_30] : memref<1x1x32xf32, #tpu.memory_space<vmem>>, vector<1x1x32xf32>
    %76 = vector.shape_cast %75 : vector<1x1x32xf32> to vector<1x32xf32>
    %c0_31 = arith.constant 0 : index
    %c0_32 = arith.constant 0 : index
    %c0_33 = arith.constant 0 : index
    %77 = vector.load %arg10[%c0_31, %c0_32, %c0_33] : memref<1x1x32xf32, #tpu.memory_space<vmem>>, vector<1x1x32xf32>
    %78 = vector.shape_cast %77 : vector<1x1x32xf32> to vector<1x32xf32>
    %cst_34 = arith.constant dense<0.000000e+00> : vector<16xf32>
    %79 = vector.multi_reduction <add>, %74, %cst_34 [1] : vector<16x32xf32> to vector<16xf32>
    %80 = vector.shape_cast %79 : vector<16xf32> to vector<16x1xf32>
    %cst_35 = arith.constant 3.200000e+01 : f32
    %81 = vector.broadcast %cst_35 : f32 to vector<16x1xf32>
    %82 = arith.divf %80, %81 : vector<16x1xf32>
    %83 = vector.broadcast %82 : vector<16x1xf32> to vector<16x32xf32>
    %84 = arith.subf %74, %83 : vector<16x32xf32>
    %85 = vector.broadcast %82 : vector<16x1xf32> to vector<16x32xf32>
    %86 = arith.subf %74, %85 : vector<16x32xf32>
    %87 = arith.mulf %84, %86 : vector<16x32xf32>
    %cst_36 = arith.constant dense<0.000000e+00> : vector<16xf32>
    %88 = vector.multi_reduction <add>, %87, %cst_36 [1] : vector<16x32xf32> to vector<16xf32>
    %89 = vector.shape_cast %88 : vector<16xf32> to vector<16x1xf32>
    %cst_37 = arith.constant 3.200000e+01 : f32
    %90 = vector.broadcast %cst_37 : f32 to vector<16x1xf32>
    %91 = arith.divf %89, %90 : vector<16x1xf32>
    %92 = vector.broadcast %82 : vector<16x1xf32> to vector<16x32xf32>
    %93 = arith.subf %74, %92 : vector<16x32xf32>
    %cst_38 = arith.constant 9.99999996E-13 : f32
    %94 = vector.broadcast %cst_38 : f32 to vector<16x1xf32>
    %95 = arith.addf %91, %94 : vector<16x1xf32>
    %96 = math.rsqrt %95 : vector<16x1xf32>
    %97 = vector.broadcast %96 : vector<16x1xf32> to vector<16x32xf32>
    %98 = arith.mulf %93, %97 : vector<16x32xf32>
    %99 = vector.broadcast %76 : vector<1x32xf32> to vector<16x32xf32>
    %100 = arith.mulf %98, %99 : vector<16x32xf32>
    %101 = vector.broadcast %78 : vector<1x32xf32> to vector<16x32xf32>
    %102 = arith.addf %100, %101 : vector<16x32xf32>
    %103 = arith.truncf %102 : vector<16x32xf32> to vector<16x32xbf16>
    %c0_39 = arith.constant 0 : index
    %c0_40 = arith.constant 0 : index
    %c0_41 = arith.constant 0 : index
    %104 = vector.load %arg11[%c0_39, %c0_40, %c0_41] : memref<1x32x64xbf16, #tpu.memory_space<vmem>>, vector<1x32x64xbf16>
    %105 = vector.shape_cast %104 : vector<1x32x64xbf16> to vector<32x64xbf16>
    %cst_42 = arith.constant dense<0.000000e+00> : vector<16x64xf32>
    %106 = tpu.matmul %103, %105, %cst_42 {dimension_numbers = #tpu.dot_dimension_numbers<[1], [0], [0], [1], [0, 0, 1, 1], [], []>} : vector<16x32xbf16>, vector<32x64xbf16>, vector<16x64xf32> -> vector<16x64xf32>
    %c0_43 = arith.constant 0 : index
    %c0_44 = arith.constant 0 : index
    %c0_45 = arith.constant 0 : index
    %107 = vector.load %arg12[%c0_43, %c0_44, %c0_45] : memref<1x1x64xf32, #tpu.memory_space<vmem>>, vector<1x1x64xf32>
    %108 = vector.shape_cast %107 : vector<1x1x64xf32> to vector<1x64xf32>
    %109 = vector.broadcast %108 : vector<1x64xf32> to vector<16x64xf32>
    %110 = arith.addf %106, %109 : vector<16x64xf32>
    %cst_46 = arith.constant 5.000000e-01 : f32
    %111 = vector.broadcast %cst_46 : f32 to vector<16x64xf32>
    %112 = arith.mulf %111, %110 : vector<16x64xf32>
    %cst_47 = arith.constant 0.707106769 : f32
    %113 = vector.broadcast %cst_47 : f32 to vector<16x64xf32>
    %114 = arith.mulf %110, %113 : vector<16x64xf32>
    %115 = math.erf %114 : vector<16x64xf32>
    %cst_48 = arith.constant 1.000000e+00 : f32
    %116 = vector.broadcast %cst_48 : f32 to vector<16x64xf32>
    %117 = arith.addf %116, %115 : vector<16x64xf32>
    %118 = arith.mulf %112, %117 : vector<16x64xf32>
    %119 = arith.truncf %118 : vector<16x64xf32> to vector<16x64xbf16>
    %c0_49 = arith.constant 0 : index
    %c0_50 = arith.constant 0 : index
    %c0_51 = arith.constant 0 : index
    %120 = vector.load %arg13[%c0_49, %c0_50, %c0_51] : memref<1x64x32xbf16, #tpu.memory_space<vmem>>, vector<1x64x32xbf16>
    %121 = vector.shape_cast %120 : vector<1x64x32xbf16> to vector<64x32xbf16>
    %cst_52 = arith.constant dense<0.000000e+00> : vector<16x32xf32>
    %122 = tpu.matmul %119, %121, %cst_52 {dimension_numbers = #tpu.dot_dimension_numbers<[1], [0], [0], [1], [0, 0, 1, 1], [], []>} : vector<16x64xbf16>, vector<64x32xbf16>, vector<16x32xf32> -> vector<16x32xf32>
    %c0_53 = arith.constant 0 : index
    %c0_54 = arith.constant 0 : index
    %c0_55 = arith.constant 0 : index
    %123 = vector.load %arg14[%c0_53, %c0_54, %c0_55] : memref<1x1x32xf32, #tpu.memory_space<vmem>>, vector<1x1x32xf32>
    %124 = vector.shape_cast %123 : vector<1x1x32xf32> to vector<1x32xf32>
    %125 = vector.broadcast %124 : vector<1x32xf32> to vector<16x32xf32>
    %126 = arith.addf %122, %125 : vector<16x32xf32>
    %127 = arith.addf %126, %102 : vector<16x32xf32>
    %c0_56 = arith.constant 0 : index
    %c0_57 = arith.constant 0 : index
    %c0_58 = arith.constant 0 : index
    %128 = vector.load %arg15[%c0_56, %c0_57, %c0_58] : memref<1x1x32xf32, #tpu.memory_space<vmem>>, vector<1x1x32xf32>
    %129 = vector.shape_cast %128 : vector<1x1x32xf32> to vector<1x32xf32>
    %c0_59 = arith.constant 0 : index
    %c0_60 = arith.constant 0 : index
    %c0_61 = arith.constant 0 : index
    %130 = vector.load %arg16[%c0_59, %c0_60, %c0_61] : memref<1x1x32xf32, #tpu.memory_space<vmem>>, vector<1x1x32xf32>
    %131 = vector.shape_cast %130 : vector<1x1x32xf32> to vector<1x32xf32>
    %cst_62 = arith.constant dense<0.000000e+00> : vector<16xf32>
    %132 = vector.multi_reduction <add>, %127, %cst_62 [1] : vector<16x32xf32> to vector<16xf32>
    %133 = vector.shape_cast %132 : vector<16xf32> to vector<16x1xf32>
    %cst_63 = arith.constant 3.200000e+01 : f32
    %134 = vector.broadcast %cst_63 : f32 to vector<16x1xf32>
    %135 = arith.divf %133, %134 : vector<16x1xf32>
    %136 = vector.broadcast %135 : vector<16x1xf32> to vector<16x32xf32>
    %137 = arith.subf %127, %136 : vector<16x32xf32>
    %138 = vector.broadcast %135 : vector<16x1xf32> to vector<16x32xf32>
    %139 = arith.subf %127, %138 : vector<16x32xf32>
    %140 = arith.mulf %137, %139 : vector<16x32xf32>
    %cst_64 = arith.constant dense<0.000000e+00> : vector<16xf32>
    %141 = vector.multi_reduction <add>, %140, %cst_64 [1] : vector<16x32xf32> to vector<16xf32>
    %142 = vector.shape_cast %141 : vector<16xf32> to vector<16x1xf32>
    %cst_65 = arith.constant 3.200000e+01 : f32
    %143 = vector.broadcast %cst_65 : f32 to vector<16x1xf32>
    %144 = arith.divf %142, %143 : vector<16x1xf32>
    %145 = vector.broadcast %135 : vector<16x1xf32> to vector<16x32xf32>
    %146 = arith.subf %127, %145 : vector<16x32xf32>
    %cst_66 = arith.constant 9.99999996E-13 : f32
    %147 = vector.broadcast %cst_66 : f32 to vector<16x1xf32>
    %148 = arith.addf %144, %147 : vector<16x1xf32>
    %149 = math.rsqrt %148 : vector<16x1xf32>
    %150 = vector.broadcast %149 : vector<16x1xf32> to vector<16x32xf32>
    %151 = arith.mulf %146, %150 : vector<16x32xf32>
    %152 = vector.broadcast %129 : vector<1x32xf32> to vector<16x32xf32>
    %153 = arith.mulf %151, %152 : vector<16x32xf32>
    %154 = vector.broadcast %131 : vector<1x32xf32> to vector<16x32xf32>
    %155 = arith.addf %153, %154 : vector<16x32xf32>
    %c0_67 = arith.constant 0 : index
    %c0_68 = arith.constant 0 : index
    %156 = vector.load %arg22[%c0_67, %c0_68] : memref<16x32xf32, #tpu.memory_space<vmem>>, vector<16x32xf32>
    tpu.vector_store %arg22[%c0_67, %c0_68], %155 {strides = array<i32>} : memref<16x32xf32, #tpu.memory_space<vmem>>, vector<16x32xf32>,
    %c1_i32 = arith.constant 1 : i32
    %157 = arith.cmpi eq, %arg0, %c1_i32 : i32
    %158 = arith.extui %157 : i1 to i32
    %c0_i32_69 = arith.constant 0 : i32
    %159 = arith.cmpi ne, %158, %c0_i32_69 : i32
    scf.if %159 {
      %160 = vector.shape_cast %155 : vector<16x32xf32> to vector<2x8x32xf32>
      %161 = vector.extract_strided_slice %160 {offsets = [0, 0, 0], sizes = [2, 1, 32], strides = [1, 1, 1]} : vector<2x8x32xf32> to vector<2x1x32xf32>
      %162 = vector.shape_cast %161 : vector<2x1x32xf32> to vector<2x32xf32>
      %163 = arith.truncf %162 : vector<2x32xf32> to vector<2x32xbf16>
      %c0_70 = arith.constant 0 : index
      %c0_71 = arith.constant 0 : index
      %164 = vector.load %arg17[%c0_70, %c0_71] : memref<32x32xbf16, #tpu.memory_space<vmem>>, vector<32x32xbf16>
      %cst_72 = arith.constant dense<0.000000e+00> : vector<2x32xf32>
      %165 = tpu.matmul %163, %164, %cst_72 {dimension_numbers = #tpu.dot_dimension_numbers<[1], [0], [0], [1], [0, 0, 1, 1], [], []>} : vector<2x32xbf16>, vector<32x32xbf16>, vector<2x32xf32> -> vector<2x32xf32>
      %c0_73 = arith.constant 0 : index
      %c0_74 = arith.constant 0 : index
      %166 = vector.load %arg18[%c0_73, %c0_74] : memref<1x32xf32, #tpu.memory_space<vmem>>, vector<1x32xf32>
      %167 = vector.broadcast %166 : vector<1x32xf32> to vector<2x32xf32>
      %168 = arith.addf %165, %167 : vector<2x32xf32>
      %169 = math.tanh %168 : vector<2x32xf32>
      %170 = arith.truncf %169 : vector<2x32xf32> to vector<2x32xbf16>
      %c0_75 = arith.constant 0 : index
      %c0_76 = arith.constant 0 : index
      %171 = vector.load %arg19[%c0_75, %c0_76] : memref<32x128xbf16, #tpu.memory_space<vmem>>, vector<32x128xbf16>
      %cst_77 = arith.constant dense<0.000000e+00> : vector<2x128xf32>
      %172 = tpu.matmul %170, %171, %cst_77 {dimension_numbers = #tpu.dot_dimension_numbers<[1], [0], [0], [1], [0, 0, 1, 1], [], []>} : vector<2x32xbf16>, vector<32x128xbf16>, vector<2x128xf32> -> vector<2x128xf32>
      %c0_78 = arith.constant 0 : index
      %c0_79 = arith.constant 0 : index
      %173 = vector.load %arg20[%c0_78, %c0_79] : memref<1x128xf32, #tpu.memory_space<vmem>>, vector<1x128xf32>
      %174 = vector.broadcast %173 : vector<1x128xf32> to vector<2x128xf32>
      %175 = arith.addf %172, %174 : vector<2x128xf32>
      %c0_80 = arith.constant 0 : index
      %c0_81 = arith.constant 0 : index
      %176 = vector.load %arg21[%c0_80, %c0_81] : memref<2x128xf32, #tpu.memory_space<vmem>>, vector<2x128xf32>
      tpu.vector_store %arg21[%c0_80, %c0_81], %175 {strides = array<i32>} : memref<2x128xf32, #tpu.memory_space<vmem>>, vector<2x128xf32>,
    } else {
    }
    return
  }
  func.func @transform_0(%arg0: i32) -> (i32, i32) {
    %c0_i32 = arith.constant 0 : i32
    %c0_i32_0 = arith.constant 0 : i32
    %c0_i32_1 = arith.constant 0 : i32
    return %c0_i32, %c0_i32_0 : i32, i32
  }
  func.func @transform_1(%arg0: i32) -> (i32, i32, i32) {
    %c0_i32 = arith.constant 0 : i32
    %c0_i32_0 = arith.constant 0 : i32
    %c0_i32_1 = arith.constant 0 : i32
    %c0_i32_2 = arith.constant 0 : i32
    return %c0_i32, %c0_i32_0, %c0_i32_1 : i32, i32, i32
  }
  func.func @transform_2(%arg0: i32) -> (i32, i32) {
    %c0_i32 = arith.constant 0 : i32
    %c0_i32_0 = arith.constant 0 : i32
    %c0_i32_1 = arith.constant 0 : i32
    return %c0_i32, %c0_i32_0 : i32, i32
  }
  func.func @transform_3(%arg0: i32) -> (i32, i32) {
    %c0_i32 = arith.constant 0 : i32
    %c0_i32_0 = arith.constant 0 : i32
    %c0_i32_1 = arith.constant 0 : i32
    return %c0_i32, %c0_i32_0 : i32, i32
  }
  func.func @transform_4(%arg0: i32) -> (i32, i32, i32) {
    %c0_i32 = arith.constant 0 : i32
    %c0_i32_0 = arith.constant 0 : i32
    %c0_i32_1 = arith.constant 0 : i32
    return %arg0, %c0_i32, %c0_i32_0 : i32, i32, i32
  }
  func.func @transform_5(%arg0: i32) -> (i32, i32, i32) {
    %c0_i32 = arith.constant 0 : i32
    %c0_i32_0 = arith.constant 0 : i32
    %c0_i32_1 = arith.constant 0 : i32
    return %arg0, %c0_i32, %c0_i32_0 : i32, i32, i32
  }
  func.func @transform_6(%arg0: i32) -> (i32, i32, i32) {
    %c0_i32 = arith.constant 0 : i32
    %c0_i32_0 = arith.constant 0 : i32
    %c0_i32_1 = arith.constant 0 : i32
    return %arg0, %c0_i32, %c0_i32_0 : i32, i32, i32
  }
  func.func @transform_7(%arg0: i32) -> (i32, i32, i32) {
    %c0_i32 = arith.constant 0 : i32
    %c0_i32_0 = arith.constant 0 : i32
    %c0_i32_1 = arith.constant 0 : i32
    return %arg0, %c0_i32, %c0_i32_0 : i32, i32, i32
  }
  func.func @transform_8(%arg0: i32) -> (i32, i32, i32) {
    %c0_i32 = arith.constant 0 : i32
    %c0_i32_0 = arith.constant 0 : i32
    %c0_i32_1 = arith.constant 0 : i32
    return %arg0, %c0_i32, %c0_i32_0 : i32, i32, i32
  }
  func.func @transform_9(%arg0: i32) -> (i32, i32, i32) {
    %c0_i32 = arith.constant 0 : i32
    %c0_i32_0 = arith.constant 0 : i32
    %c0_i32_1 = arith.constant 0 : i32
    return %arg0, %c0_i32, %c0_i32_0 : i32, i32, i32
  }
  func.func @transform_10(%arg0: i32) -> (i32, i32, i32) {
    %c0_i32 = arith.constant 0 : i32
    %c0_i32_0 = arith.constant 0 : i32
    %c0_i32_1 = arith.constant 0 : i32
    return %arg0, %c0_i32, %c0_i32_0 : i32, i32, i32
  }
  func.func @transform_11(%arg0: i32) -> (i32, i32, i32) {
    %c0_i32 = arith.constant 0 : i32
    %c0_i32_0 = arith.constant 0 : i32
    %c0_i32_1 = arith.constant 0 : i32
    return %arg0, %c0_i32, %c0_i32_0 : i32, i32, i32
  }
  func.func @transform_12(%arg0: i32) -> (i32, i32, i32) {
    %c0_i32 = arith.constant 0 : i32
    %c0_i32_0 = arith.constant 0 : i32
    %c0_i32_1 = arith.constant 0 : i32
    return %arg0, %c0_i32, %c0_i32_0 : i32, i32, i32
  }
  func.func @transform_13(%arg0: i32) -> (i32, i32, i32) {
    %c0_i32 = arith.constant 0 : i32
    %c0_i32_0 = arith.constant 0 : i32
    %c0_i32_1 = arith.constant 0 : i32
    return %arg0, %c0_i32, %c0_i32_0 : i32, i32, i32
  }
  func.func @transform_14(%arg0: i32) -> (i32, i32, i32) {
    %c0_i32 = arith.constant 0 : i32
    %c0_i32_0 = arith.constant 0 : i32
    %c0_i32_1 = arith.constant 0 : i32
    return %arg0, %c0_i32, %c0_i32_0 : i32, i32, i32
  }
  func.func @transform_15(%arg0: i32) -> (i32, i32, i32) {
    %c0_i32 = arith.constant 0 : i32
    %c0_i32_0 = arith.constant 0 : i32
    %c0_i32_1 = arith.constant 0 : i32
    return %arg0, %c0_i32, %c0_i32_0 : i32, i32, i32
  }
  func.func @transform_16(%arg0: i32) -> (i32, i32) {
    %c0_i32 = arith.constant 0 : i32
    %c0_i32_0 = arith.constant 0 : i32
    %c0_i32_1 = arith.constant 0 : i32
    return %c0_i32, %c0_i32_0 : i32, i32
  }
  func.func @transform_17(%arg0: i32) -> (i32, i32) {
    %c0_i32 = arith.constant 0 : i32
    %c0_i32_0 = arith.constant 0 : i32
    %c0_i32_1 = arith.constant 0 : i32
    return %c0_i32, %c0_i32_0 : i32, i32
  }
  func.func @transform_18(%arg0: i32) -> (i32, i32) {
    %c0_i32 = arith.constant 0 : i32
    %c0_i32_0 = arith.constant 0 : i32
    %c0_i32_1 = arith.constant 0 : i32
    return %c0_i32, %c0_i32_0 : i32, i32
  }
  func.func @transform_19(%arg0: i32) -> (i32, i32) {
    %c0_i32 = arith.constant 0 : i32
    %c0_i32_0 = arith.constant 0 : i32
    %c0_i32_1 = arith.constant 0 : i32
    return %c0_i32, %c0_i32_0 : i32, i32
  }
  func.func @transform_20(%arg0: i32) -> (i32, i32) {
    %c0_i32 = arith.constant 0 : i32
    %c0_i32_0 = arith.constant 0 : i32
    %c0_i32_1 = arith.constant 0 : i32
    return %c0_i32, %c0_i32_0 : i32, i32
  }
}

</mosaic_0001>

<llo_original>
// kernel: bert_classifier_forward.1
$region0: #{bert_classifier_forward.1}
  #allocation0 [shape = 'u32[]', space=smem, size = 0x4, offset = 0x4, fixed_abs, tag = 'smem constant byte address 0x4 - core index']
  #allocation1 [shape = 'u32[144,128]{1,0:T(1,128)}', space=vmem, size = 0x12000, scoped, tag = 'internal scratch']
  #allocation2 [shape = 'f32[16,32]{1,0:T(8,128)}', space=vmem, size = 0x2000, scoped, tag = 'scratch operand']
  %s0 = inlined_call_operand.vmem [shape: f32[16,32], index: 0, kind: input, shape index: {}]
  %s1 = inlined_call_operand.vmem [shape: f32[2,8,8], index: 1, kind: input, shape index: {}]
  %s2 = inlined_call_operand.vmem [shape: f32[1,32], index: 2, kind: input, shape index: {}]
  %s3 = inlined_call_operand.vmem [shape: f32[1,32], index: 3, kind: input, shape index: {}]
  %s4 = inlined_call_operand.vmem [shape: bf16[2,32,96], index: 4, kind: input, shape index: {}]
  %s5 = inlined_call_operand.vmem [shape: f32[2,1,96], index: 5, kind: input, shape index: {}]
  %s6 = inlined_call_operand.vmem [shape: bf16[2,32,32], index: 6, kind: input, shape index: {}]
  %s7 = inlined_call_operand.vmem [shape: f32[2,1,32], index: 7, kind: input, shape index: {}]
  %s8 = inlined_call_operand.vmem [shape: f32[2,1,32], index: 8, kind: input, shape index: {}]
  %s9 = inlined_call_operand.vmem [shape: f32[2,1,32], index: 9, kind: input, shape index: {}]
  %s10 = inlined_call_operand.vmem [shape: bf16[2,32,64], index: 10, kind: input, shape index: {}]
  %s11 = inlined_call_operand.vmem [shape: f32[2,1,64], index: 11, kind: input, shape index: {}]
  %s12 = inlined_call_operand.vmem [shape: bf16[2,64,32], index: 12, kind: input, shape index: {}]
  %s13 = inlined_call_operand.vmem [shape: f32[2,1,32], index: 13, kind: input, shape index: {}]
  %s14 = inlined_call_operand.vmem [shape: f32[2,1,32], index: 14, kind: input, shape index: {}]
  %s15 = inlined_call_operand.vmem [shape: f32[2,1,32], index: 15, kind: input, shape index: {}]
  %s16 = inlined_call_operand.vmem [shape: bf16[32,32], index: 16, kind: input, shape index: {}]
  %s17 = inlined_call_operand.vmem [shape: f32[1,32], index: 17, kind: input, shape index: {}]
  %s18 = inlined_call_operand.vmem [shape: bf16[32,128], index: 18, kind: input, shape index: {}]
  %s19 = inlined_call_operand.vmem [shape: f32[1,128], index: 19, kind: input, shape index: {}]
  %s20 = inlined_call_operand.hbm [shape: f32[2,128], index: 20, kind: output, shape index: {}]
  %s21 = sld [smem:[#allocation0]]
  $region121: #{bert_classifier_forward.1} parent=0
    _
  %s23 = ssub.s32 1, %s21
  %s24 = scalar_select 0, %s23, %s21
  $region1: #{bert_classifier_forward.1} parent=0
    #allocation3 [shape = 'u8[1024]{0}', space=vmem, size = 0x400, scoped, tag = 'output window, operand 0, single buffered']
    #allocation4 [shape = 's32[2]{0}', space=sflag, size = 0x8, scoped, tag = 'scoped memory for bert_classifier_forward.1']
    %25 = vsyncpa [#allocation4], 0
    loop: start=0, step=1, limit=4
    $region2: #{bert_classifier_forward.1} parent=1 // loop_pre_header
      _
    $region3: #{bert_classifier_forward.1} parent=1 // loop_header
      %s27 = sphi 0, %s31
      %p28 = scmp.ge.s32.totalorder %s27, 4
      %s35 = sphi 0, %s35
      %s37 = sphi 0, %s35
      %s38 = sphi 0, %s37
      %s52 = sphi 0, %s38
      %s56 = sphi 0, %s56
      %s58 = sphi 0, %s56
      %s59 = sphi 0, %s58
      %s73 = sphi 0, %s59
      %s77 = sphi 0, %s77
      %s79 = sphi 0, %s77
      %s80 = sphi 0, %s79
      %s94 = sphi 0, %s80
      %s98 = sphi 0, %s98
      %s100 = sphi 0, %s98
      %s101 = sphi 0, %s100
      %s115 = sphi 0, %s101
      %s121 = sphi 0, %s123
      %s124 = sphi 0, %s121
      %s125 = sphi 0, %s124
      %s141 = sphi 0, %s125
      %s147 = sphi 0, %s149
      %s150 = sphi 0, %s147
      %s151 = sphi 0, %s150
      %s167 = sphi 0, %s151
      %s173 = sphi 0, %s175
      %s176 = sphi 0, %s173
      %s177 = sphi 0, %s176
      %s193 = sphi 0, %s177
      %s199 = sphi 0, %s201
      %s202 = sphi 0, %s199
      %s203 = sphi 0, %s202
      %s219 = sphi 0, %s203
      %s225 = sphi 0, %s227
      %s228 = sphi 0, %s225
      %s229 = sphi 0, %s228
      %s245 = sphi 0, %s229
      %s251 = sphi 0, %s253
      %s254 = sphi 0, %s251
      %s255 = sphi 0, %s254
      %s271 = sphi 0, %s255
      %s277 = sphi 0, %s279
      %s280 = sphi 0, %s277
      %s281 = sphi 0, %s280
      %s297 = sphi 0, %s281
      %s303 = sphi 0, %s305
      %s306 = sphi 0, %s303
      %s307 = sphi 0, %s306
      %s323 = sphi 0, %s307
      %s329 = sphi 0, %s331
      %s332 = sphi 0, %s329
      %s333 = sphi 0, %s332
      %s349 = sphi 0, %s333
      %s355 = sphi 0, %s357
      %s358 = sphi 0, %s355
      %s359 = sphi 0, %s358
      %s375 = sphi 0, %s359
      %s381 = sphi 0, %s383
      %s384 = sphi 0, %s381
      %s385 = sphi 0, %s384
      %s401 = sphi 0, %s385
      %s407 = sphi 0, %s409
      %s410 = sphi 0, %s407
      %s411 = sphi 0, %s410
      %s427 = sphi 0, %s411
      %s431 = sphi 0, %s431
      %s433 = sphi 0, %s431
      %s434 = sphi 0, %s433
      %s448 = sphi 0, %s434
      %s452 = sphi 0, %s452
      %s454 = sphi 0, %s452
      %s455 = sphi 0, %s454
      %s469 = sphi 0, %s455
      %s473 = sphi 0, %s473
      %s475 = sphi 0, %s473
      %s476 = sphi 0, %s475
      %s490 = sphi 0, %s476
      %s494 = sphi 0, %s494
      %s496 = sphi 0, %s494
      %s497 = sphi 0, %s496
      %s511 = sphi 0, %s497
      %s515 = sphi 0, %s515
      %s517 = sphi 0, %s515
      %s518 = sphi 0, %s517
      %s532 = sphi 0, %s518
    $region4: #{bert_classifier_forward.1} parent=1 // loop_header_branch
      %30 = sbr.rel (%p28) target = $region8
    $region5: #{bert_classifier_forward.1} parent=1 // loop_body
      %s32 = ssub.s32 %s27, 1
      %s33 = ssub.s32 %s27, 2
      %s34 = sadd.s32 %s27, 1
      %s36 = sadd.s32 %s35, 1
      %p39 = scmp.eq.s32.totalorder %s27, 1
      %p40 = scmp.ne.s32.totalorder %s35, %s37
      %p41 = scmp.eq.s32.totalorder %s27, 0
      %p42 = por %p40, %p41
      %p43 = scmp.ne.s32.totalorder %s35, %s37
      %p44 = scmp.eq.s32.totalorder %s32, 1
      %p45 = por %p43, %p44
      %p46 = scmp.ne.s32.totalorder %s37, %s38
      %p47 = scmp.eq.s32.totalorder %s32, 0
      %p48 = por %p46, %p47
      %p49 = scmp.ne.s32.totalorder %s37, %s38
      %p50 = scmp.eq.s32.totalorder %s33, 1
      %p51 = por %p49, %p50
      %p53 = scmp.ne.s32.totalorder %s38, %s52
      %p54 = scmp.eq.s32.totalorder %s33, 0
      %p55 = por %p53, %p54
      %s57 = sadd.s32 %s56, 1
      %p60 = scmp.eq.s32.totalorder %s27, 1
      %p61 = scmp.ne.s32.totalorder %s56, %s58
      %p62 = scmp.eq.s32.totalorder %s27, 0
      %p63 = por %p61, %p62
      %p64 = scmp.ne.s32.totalorder %s56, %s58
      %p65 = scmp.eq.s32.totalorder %s32, 1
      %p66 = por %p64, %p65
      %p67 = scmp.ne.s32.totalorder %s58, %s59
      %p68 = scmp.eq.s32.totalorder %s32, 0
      %p69 = por %p67, %p68
      %p70 = scmp.ne.s32.totalorder %s58, %s59
      %p71 = scmp.eq.s32.totalorder %s33, 1
      %p72 = por %p70, %p71
      %p74 = scmp.ne.s32.totalorder %s59, %s73
      %p75 = scmp.eq.s32.totalorder %s33, 0
      %p76 = por %p74, %p75
      %s78 = sadd.s32 %s77, 1
      %p81 = scmp.eq.s32.totalorder %s27, 1
      %p82 = scmp.ne.s32.totalorder %s77, %s79
      %p83 = scmp.eq.s32.totalorder %s27, 0
      %p84 = por %p82, %p83
      %p85 = scmp.ne.s32.totalorder %s77, %s79
      %p86 = scmp.eq.s32.totalorder %s32, 1
      %p87 = por %p85, %p86
      %p88 = scmp.ne.s32.totalorder %s79, %s80
      %p89 = scmp.eq.s32.totalorder %s32, 0
      %p90 = por %p88, %p89
      %p91 = scmp.ne.s32.totalorder %s79, %s80
      %p92 = scmp.eq.s32.totalorder %s33, 1
      %p93 = por %p91, %p92
      %p95 = scmp.ne.s32.totalorder %s80, %s94
      %p96 = scmp.eq.s32.totalorder %s33, 0
      %p97 = por %p95, %p96
      %s99 = sadd.s32 %s98, 1
      %p102 = scmp.eq.s32.totalorder %s27, 1
      %p103 = scmp.ne.s32.totalorder %s98, %s100
      %p104 = scmp.eq.s32.totalorder %s27, 0
      %p105 = por %p103, %p104
      %p106 = scmp.ne.s32.totalorder %s98, %s100
      %p107 = scmp.eq.s32.totalorder %s32, 1
      %p108 = por %p106, %p107
      %p109 = scmp.ne.s32.totalorder %s100, %s101
      %p110 = scmp.eq.s32.totalorder %s32, 0
      %p111 = por %p109, %p110
      %p112 = scmp.ne.s32.totalorder %s100, %s101
      %p113 = scmp.eq.s32.totalorder %s33, 1
      %p114 = por %p112, %p113
      %p116 = scmp.ne.s32.totalorder %s101, %s115
      %p117 = scmp.eq.s32.totalorder %s33, 0
      %p118 = por %p116, %p117
      %s119 = ssub.s32 %s27, %s34
      %p120 = scmp.eq.s32.totalorder %s119, 0
      %s122 = sadd.s32 %s121, 1
      %s123 = scalar_select %p120, %s121, %s122
      %p126 = pneg %p120
      %p127 = scmp.eq.s32.totalorder %s27, 1
      %p128 = por %p126, %p127
      %p129 = scmp.ne.s32.totalorder %s121, %s124
      %p130 = scmp.eq.s32.totalorder %s27, 0
      %p131 = por %p129, %p130
      %p132 = scmp.ne.s32.totalorder %s121, %s124
      %p133 = scmp.eq.s32.totalorder %s32, 1
      %p134 = por %p132, %p133
      %p135 = scmp.ne.s32.totalorder %s124, %s125
      %p136 = scmp.eq.s32.totalorder %s32, 0
      %p137 = por %p135, %p136
      %p138 = scmp.ne.s32.totalorder %s124, %s125
      %p139 = scmp.eq.s32.totalorder %s33, 1
      %p140 = por %p138, %p139
      %p142 = scmp.ne.s32.totalorder %s125, %s141
      %p143 = scmp.eq.s32.totalorder %s33, 0
      %p144 = por %p142, %p143
      %s145 = ssub.s32 %s27, %s34
      %p146 = scmp.eq.s32.totalorder %s145, 0
      %s148 = sadd.s32 %s147, 1
      %s149 = scalar_select %p146, %s147, %s148
      %p152 = pneg %p146
      %p153 = scmp.eq.s32.totalorder %s27, 1
      %p154 = por %p152, %p153
      %p155 = scmp.ne.s32.totalorder %s147, %s150
      %p156 = scmp.eq.s32.totalorder %s27, 0
      %p157 = por %p155, %p156
      %p158 = scmp.ne.s32.totalorder %s147, %s150
      %p159 = scmp.eq.s32.totalorder %s32, 1
      %p160 = por %p158, %p159
      %p161 = scmp.ne.s32.totalorder %s150, %s151
      %p162 = scmp.eq.s32.totalorder %s32, 0
      %p163 = por %p161, %p162
      %p164 = scmp.ne.s32.totalorder %s150, %s151
      %p165 = scmp.eq.s32.totalorder %s33, 1
      %p166 = por %p164, %p165
      %p168 = scmp.ne.s32.totalorder %s151, %s167
      %p169 = scmp.eq.s32.totalorder %s33, 0
      %p170 = por %p168, %p169
      %s171 = ssub.s32 %s27, %s34
      %p172 = scmp.eq.s32.totalorder %s171, 0
      %s174 = sadd.s32 %s173, 1
      %s175 = scalar_select %p172, %s173, %s174
      %p178 = pneg %p172
      %p179 = scmp.eq.s32.totalorder %s27, 1
      %p180 = por %p178, %p179
      %p181 = scmp.ne.s32.totalorder %s173, %s176
      %p182 = scmp.eq.s32.totalorder %s27, 0
      %p183 = por %p181, %p182
      %p184 = scmp.ne.s32.totalorder %s173, %s176
      %p185 = scmp.eq.s32.totalorder %s32, 1
      %p186 = por %p184, %p185
      %p187 = scmp.ne.s32.totalorder %s176, %s177
      %p188 = scmp.eq.s32.totalorder %s32, 0
      %p189 = por %p187, %p188
      %p190 = scmp.ne.s32.totalorder %s176, %s177
      %p191 = scmp.eq.s32.totalorder %s33, 1
      %p192 = por %p190, %p191
      %p194 = scmp.ne.s32.totalorder %s177, %s193
      %p195 = scmp.eq.s32.totalorder %s33, 0
      %p196 = por %p194, %p195
      %s197 = ssub.s32 %s27, %s34
      %p198 = scmp.eq.s32.totalorder %s197, 0
      %s200 = sadd.s32 %s199, 1
      %s201 = scalar_select %p198, %s199, %s200
      %p204 = pneg %p198
      %p205 = scmp.eq.s32.totalorder %s27, 1
      %p206 = por %p204, %p205
      %p207 = scmp.ne.s32.totalorder %s199, %s202
      %p208 = scmp.eq.s32.totalorder %s27, 0
      %p209 = por %p207, %p208
      %p210 = scmp.ne.s32.totalorder %s199, %s202
      %p211 = scmp.eq.s32.totalorder %s32, 1
      %p212 = por %p210, %p211
      %p213 = scmp.ne.s32.totalorder %s202, %s203
      %p214 = scmp.eq.s32.totalorder %s32, 0
      %p215 = por %p213, %p214
      %p216 = scmp.ne.s32.totalorder %s202, %s203
      %p217 = scmp.eq.s32.totalorder %s33, 1
      %p218 = por %p216, %p217
      %p220 = scmp.ne.s32.totalorder %s203, %s219
      %p221 = scmp.eq.s32.totalorder %s33, 0
      %p222 = por %p220, %p221
      %s223 = ssub.s32 %s27, %s34
      %p224 = scmp.eq.s32.totalorder %s223, 0
      %s226 = sadd.s32 %s225, 1
      %s227 = scalar_select %p224, %s225, %s226
      %p230 = pneg %p224
      %p231 = scmp.eq.s32.totalorder %s27, 1
      %p232 = por %p230, %p231
      %p233 = scmp.ne.s32.totalorder %s225, %s228
      %p234 = scmp.eq.s32.totalorder %s27, 0
      %p235 = por %p233, %p234
      %p236 = scmp.ne.s32.totalorder %s225, %s228
      %p237 = scmp.eq.s32.totalorder %s32, 1
      %p238 = por %p236, %p237
      %p239 = scmp.ne.s32.totalorder %s228, %s229
      %p240 = scmp.eq.s32.totalorder %s32, 0
      %p241 = por %p239, %p240
      %p242 = scmp.ne.s32.totalorder %s228, %s229
      %p243 = scmp.eq.s32.totalorder %s33, 1
      %p244 = por %p242, %p243
      %p246 = scmp.ne.s32.totalorder %s229, %s245
      %p247 = scmp.eq.s32.totalorder %s33, 0
      %p248 = por %p246, %p247
      %s249 = ssub.s32 %s27, %s34
      %p250 = scmp.eq.s32.totalorder %s249, 0
      %s252 = sadd.s32 %s251, 1
      %s253 = scalar_select %p250, %s251, %s252
      %p256 = pneg %p250
      %p257 = scmp.eq.s32.totalorder %s27, 1
      %p258 = por %p256, %p257
      %p259 = scmp.ne.s32.totalorder %s251, %s254
      %p260 = scmp.eq.s32.totalorder %s27, 0
      %p261 = por %p259, %p260
      %p262 = scmp.ne.s32.totalorder %s251, %s254
      %p263 = scmp.eq.s32.totalorder %s32, 1
      %p264 = por %p262, %p263
      %p265 = scmp.ne.s32.totalorder %s254, %s255
      %p266 = scmp.eq.s32.totalorder %s32, 0
      %p267 = por %p265, %p266
      %p268 = scmp.ne.s32.totalorder %s254, %s255
      %p269 = scmp.eq.s32.totalorder %s33, 1
      %p270 = por %p268, %p269
      %p272 = scmp.ne.s32.totalorder %s255, %s271
      %p273 = scmp.eq.s32.totalorder %s33, 0
      %p274 = por %p272, %p273
      %s275 = ssub.s32 %s27, %s34
      %p276 = scmp.eq.s32.totalorder %s275, 0
      %s278 = sadd.s32 %s277, 1
      %s279 = scalar_select %p276, %s277, %s278
      %p282 = pneg %p276
      %p283 = scmp.eq.s32.totalorder %s27, 1
      %p284 = por %p282, %p283
      %p285 = scmp.ne.s32.totalorder %s277, %s280
      %p286 = scmp.eq.s32.totalorder %s27, 0
      %p287 = por %p285, %p286
      %p288 = scmp.ne.s32.totalorder %s277, %s280
      %p289 = scmp.eq.s32.totalorder %s32, 1
      %p290 = por %p288, %p289
      %p291 = scmp.ne.s32.totalorder %s280, %s281
      %p292 = scmp.eq.s32.totalorder %s32, 0
      %p293 = por %p291, %p292
      %p294 = scmp.ne.s32.totalorder %s280, %s281
      %p295 = scmp.eq.s32.totalorder %s33, 1
      %p296 = por %p294, %p295
      %p298 = scmp.ne.s32.totalorder %s281, %s297
      %p299 = scmp.eq.s32.totalorder %s33, 0
      %p300 = por %p298, %p299
      %s301 = ssub.s32 %s27, %s34
      %p302 = scmp.eq.s32.totalorder %s301, 0
      %s304 = sadd.s32 %s303, 1
      %s305 = scalar_select %p302, %s303, %s304
      %p308 = pneg %p302
      %p309 = scmp.eq.s32.totalorder %s27, 1
      %p310 = por %p308, %p309
      %p311 = scmp.ne.s32.totalorder %s303, %s306
      %p312 = scmp.eq.s32.totalorder %s27, 0
      %p313 = por %p311, %p312
      %p314 = scmp.ne.s32.totalorder %s303, %s306
      %p315 = scmp.eq.s32.totalorder %s32, 1
      %p316 = por %p314, %p315
      %p317 = scmp.ne.s32.totalorder %s306, %s307
      %p318 = scmp.eq.s32.totalorder %s32, 0
      %p319 = por %p317, %p318
      %p320 = scmp.ne.s32.totalorder %s306, %s307
      %p321 = scmp.eq.s32.totalorder %s33, 1
      %p322 = por %p320, %p321
      %p324 = scmp.ne.s32.totalorder %s307, %s323
      %p325 = scmp.eq.s32.totalorder %s33, 0
      %p326 = por %p324, %p325
      %s327 = ssub.s32 %s27, %s34
      %p328 = scmp.eq.s32.totalorder %s327, 0
      %s330 = sadd.s32 %s329, 1
      %s331 = scalar_select %p328, %s329, %s330
      %p334 = pneg %p328
      %p335 = scmp.eq.s32.totalorder %s27, 1
      %p336 = por %p334, %p335
      %p337 = scmp.ne.s32.totalorder %s329, %s332
      %p338 = scmp.eq.s32.totalorder %s27, 0
      %p339 = por %p337, %p338
      %p340 = scmp.ne.s32.totalorder %s329, %s332
      %p341 = scmp.eq.s32.totalorder %s32, 1
      %p342 = por %p340, %p341
      %p343 = scmp.ne.s32.totalorder %s332, %s333
      %p344 = scmp.eq.s32.totalorder %s32, 0
      %p345 = por %p343, %p344
      %p346 = scmp.ne.s32.totalorder %s332, %s333
      %p347 = scmp.eq.s32.totalorder %s33, 1
      %p348 = por %p346, %p347
      %p350 = scmp.ne.s32.totalorder %s333, %s349
      %p351 = scmp.eq.s32.totalorder %s33, 0
      %p352 = por %p350, %p351
      %s353 = ssub.s32 %s27, %s34
      %p354 = scmp.eq.s32.totalorder %s353, 0
      %s356 = sadd.s32 %s355, 1
      %s357 = scalar_select %p354, %s355, %s356
      %p360 = pneg %p354
      %p361 = scmp.eq.s32.totalorder %s27, 1
      %p362 = por %p360, %p361
      %p363 = scmp.ne.s32.totalorder %s355, %s358
      %p364 = scmp.eq.s32.totalorder %s27, 0
      %p365 = por %p363, %p364
      %p366 = scmp.ne.s32.totalorder %s355, %s358
      %p367 = scmp.eq.s32.totalorder %s32, 1
      %p368 = por %p366, %p367
      %p369 = scmp.ne.s32.totalorder %s358, %s359
      %p370 = scmp.eq.s32.totalorder %s32, 0
      %p371 = por %p369, %p370
      %p372 = scmp.ne.s32.totalorder %s358, %s359
      %p373 = scmp.eq.s32.totalorder %s33, 1
      %p374 = por %p372, %p373
      %p376 = scmp.ne.s32.totalorder %s359, %s375
      %p377 = scmp.eq.s32.totalorder %s33, 0
      %p378 = por %p376, %p377
      %s379 = ssub.s32 %s27, %s34
      %p380 = scmp.eq.s32.totalorder %s379, 0
      %s382 = sadd.s32 %s381, 1
      %s383 = scalar_select %p380, %s381, %s382
      %p386 = pneg %p380
      %p387 = scmp.eq.s32.totalorder %s27, 1
      %p388 = por %p386, %p387
      %p389 = scmp.ne.s32.totalorder %s381, %s384
      %p390 = scmp.eq.s32.totalorder %s27, 0
      %p391 = por %p389, %p390
      %p392 = scmp.ne.s32.totalorder %s381, %s384
      %p393 = scmp.eq.s32.totalorder %s32, 1
      %p394 = por %p392, %p393
      %p395 = scmp.ne.s32.totalorder %s384, %s385
      %p396 = scmp.eq.s32.totalorder %s32, 0
      %p397 = por %p395, %p396
      %p398 = scmp.ne.s32.totalorder %s384, %s385
      %p399 = scmp.eq.s32.totalorder %s33, 1
      %p400 = por %p398, %p399
      %p402 = scmp.ne.s32.totalorder %s385, %s401
      %p403 = scmp.eq.s32.totalorder %s33, 0
      %p404 = por %p402, %p403
      %s405 = ssub.s32 %s27, %s34
      %p406 = scmp.eq.s32.totalorder %s405, 0
      %s408 = sadd.s32 %s407, 1
      %s409 = scalar_select %p406, %s407, %s408
      %p412 = pneg %p406
      %p413 = scmp.eq.s32.totalorder %s27, 1
      %p414 = por %p412, %p413
      %p415 = scmp.ne.s32.totalorder %s407, %s410
      %p416 = scmp.eq.s32.totalorder %s27, 0
      %p417 = por %p415, %p416
      %p418 = scmp.ne.s32.totalorder %s407, %s410
      %p419 = scmp.eq.s32.totalorder %s32, 1
      %p420 = por %p418, %p419
      %p421 = scmp.ne.s32.totalorder %s410, %s411
      %p422 = scmp.eq.s32.totalorder %s32, 0
      %p423 = por %p421, %p422
      %p424 = scmp.ne.s32.totalorder %s410, %s411
      %p425 = scmp.eq.s32.totalorder %s33, 1
      %p426 = por %p424, %p425
      %p428 = scmp.ne.s32.totalorder %s411, %s427
      %p429 = scmp.eq.s32.totalorder %s33, 0
      %p430 = por %p428, %p429
      %s432 = sadd.s32 %s431, 1
      %p435 = scmp.eq.s32.totalorder %s27, 1
      %p436 = scmp.ne.s32.totalorder %s431, %s433
      %p437 = scmp.eq.s32.totalorder %s27, 0
      %p438 = por %p436, %p437
      %p439 = scmp.ne.s32.totalorder %s431, %s433
      %p440 = scmp.eq.s32.totalorder %s32, 1
      %p441 = por %p439, %p440
      %p442 = scmp.ne.s32.totalorder %s433, %s434
      %p443 = scmp.eq.s32.totalorder %s32, 0
      %p444 = por %p442, %p443
      %p445 = scmp.ne.s32.totalorder %s433, %s434
      %p446 = scmp.eq.s32.totalorder %s33, 1
      %p447 = por %p445, %p446
      %p449 = scmp.ne.s32.totalorder %s434, %s448
      %p450 = scmp.eq.s32.totalorder %s33, 0
      %p451 = por %p449, %p450
      %s453 = sadd.s32 %s452, 1
      %p456 = scmp.eq.s32.totalorder %s27, 1
      %p457 = scmp.ne.s32.totalorder %s452, %s454
      %p458 = scmp.eq.s32.totalorder %s27, 0
      %p459 = por %p457, %p458
      %p460 = scmp.ne.s32.totalorder %s452, %s454
      %p461 = scmp.eq.s32.totalorder %s32, 1
      %p462 = por %p460, %p461
      %p463 = scmp.ne.s32.totalorder %s454, %s455
      %p464 = scmp.eq.s32.totalorder %s32, 0
      %p465 = por %p463, %p464
      %p466 = scmp.ne.s32.totalorder %s454, %s455
      %p467 = scmp.eq.s32.totalorder %s33, 1
      %p468 = por %p466, %p467
      %p470 = scmp.ne.s32.totalorder %s455, %s469
      %p471 = scmp.eq.s32.totalorder %s33, 0
      %p472 = por %p470, %p471
      %s474 = sadd.s32 %s473, 1
      %p477 = scmp.eq.s32.totalorder %s27, 1
      %p478 = scmp.ne.s32.totalorder %s473, %s475
      %p479 = scmp.eq.s32.totalorder %s27, 0
      %p480 = por %p478, %p479
      %p481 = scmp.ne.s32.totalorder %s473, %s475
      %p482 = scmp.eq.s32.totalorder %s32, 1
      %p483 = por %p481, %p482
      %p484 = scmp.ne.s32.totalorder %s475, %s476
      %p485 = scmp.eq.s32.totalorder %s32, 0
      %p486 = por %p484, %p485
      %p487 = scmp.ne.s32.totalorder %s475, %s476
      %p488 = scmp.eq.s32.totalorder %s33, 1
      %p489 = por %p487, %p488
      %p491 = scmp.ne.s32.totalorder %s476, %s490
      %p492 = scmp.eq.s32.totalorder %s33, 0
      %p493 = por %p491, %p492
      %s495 = sadd.s32 %s494, 1
      %p498 = scmp.eq.s32.totalorder %s27, 1
      %p499 = scmp.ne.s32.totalorder %s494, %s496
      %p500 = scmp.eq.s32.totalorder %s27, 0
      %p501 = por %p499, %p500
      %p502 = scmp.ne.s32.totalorder %s494, %s496
      %p503 = scmp.eq.s32.totalorder %s32, 1
      %p504 = por %p502, %p503
      %p505 = scmp.ne.s32.totalorder %s496, %s497
      %p506 = scmp.eq.s32.totalorder %s32, 0
      %p507 = por %p505, %p506
      %p508 = scmp.ne.s32.totalorder %s496, %s497
      %p509 = scmp.eq.s32.totalorder %s33, 1
      %p510 = por %p508, %p509
      %p512 = scmp.ne.s32.totalorder %s497, %s511
      %p513 = scmp.eq.s32.totalorder %s33, 0
      %p514 = por %p512, %p513
      %s516 = sadd.s32 %s515, 1
      %p519 = scmp.eq.s32.totalorder %s27, 1
      %p520 = scmp.ne.s32.totalorder %s515, %s517
      %p521 = scmp.eq.s32.totalorder %s27, 0
      %p522 = por %p520, %p521
      %p523 = scmp.ne.s32.totalorder %s515, %s517
      %p524 = scmp.eq.s32.totalorder %s32, 1
      %p525 = por %p523, %p524
      %p526 = scmp.ne.s32.totalorder %s517, %s518
      %p527 = scmp.eq.s32.totalorder %s32, 0
      %p528 = por %p526, %p527
      %p529 = scmp.ne.s32.totalorder %s517, %s518
      %p530 = scmp.eq.s32.totalorder %s33, 1
      %p531 = por %p529, %p530
      %p533 = scmp.ne.s32.totalorder %s518, %s532
      %p534 = scmp.eq.s32.totalorder %s33, 0
      %p535 = por %p533, %p534
      %p536 = scmp.le.s32.totalorder 1, %s27
      %p537 = scmp.lt.s32.totalorder %s27, 3
      %p538 = pnand %p536, %p537
      %p539 = pneg %p538
      // Predicated region
      $region9: #{bert_classifier_forward.1} parent=5 // pred_check
        _
      $region10: #{bert_classifier_forward.1} parent=5 // pred_check_branch
        %541 = sbr.rel (%p538) target = $region12
      $region11: #{bert_classifier_forward.1} parent=5 // pred_region
        %s542 = ssub.s32 %s27, 1
        // Predicated region
        $region13: #{bert_classifier_forward.1} parent=11 // pred_check
          %p543 = pneg %p48
        $region14: #{bert_classifier_forward.1} parent=11 // pred_check_branch
          %545 = sbr.rel (%p543) target = $region16
        $region15: #{bert_classifier_forward.1} parent=11 // pred_region
          _
        $region16: #{bert_classifier_forward.1} parent=11 // pred_fallthru
          _
        // Predicated region
        $region17: #{bert_classifier_forward.1} parent=11 // pred_check
          %p546 = pneg %p69
        $region18: #{bert_classifier_forward.1} parent=11 // pred_check_branch
          %548 = sbr.rel (%p546) target = $region20
        $region19: #{bert_classifier_forward.1} parent=11 // pred_region
          _
        $region20: #{bert_classifier_forward.1} parent=11 // pred_fallthru
          _
        // Predicated region
        $region21: #{bert_classifier_forward.1} parent=11 // pred_check
          %p549 = pneg %p90
        $region22: #{bert_classifier_forward.1} parent=11 // pred_check_branch
          %551 = sbr.rel (%p549) target = $region24
        $region23: #{bert_classifier_forward.1} parent=11 // pred_region
          _
        $region24: #{bert_classifier_forward.1} parent=11 // pred_fallthru
          _
        // Predicated region
        $region25: #{bert_classifier_forward.1} parent=11 // pred_check
          %p552 = pneg %p111
        $region26: #{bert_classifier_forward.1} parent=11 // pred_check_branch
          %554 = sbr.rel (%p552) target = $region28
        $region27: #{bert_classifier_forward.1} parent=11 // pred_region
          _
        $region28: #{bert_classifier_forward.1} parent=11 // pred_fallthru
          _
        // Predicated region
        $region29: #{bert_classifier_forward.1} parent=11 // pred_check
          %p555 = pneg %p444
        $region30: #{bert_classifier_forward.1} parent=11 // pred_check_branch
          %557 = sbr.rel (%p555) target = $region32
        $region31: #{bert_classifier_forward.1} parent=11 // pred_region
          _
        $region32: #{bert_classifier_forward.1} parent=11 // pred_fallthru
          _
        // Predicated region
        $region33: #{bert_classifier_forward.1} parent=11 // pred_check
          %p558 = pneg %p465
        $region34: #{bert_classifier_forward.1} parent=11 // pred_check_branch
          %560 = sbr.rel (%p558) target = $region36
        $region35: #{bert_classifier_forward.1} parent=11 // pred_region
          _
        $region36: #{bert_classifier_forward.1} parent=11 // pred_fallthru
          _
        // Predicated region
        $region37: #{bert_classifier_forward.1} parent=11 // pred_check
          %p561 = pneg %p486
        $region38: #{bert_classifier_forward.1} parent=11 // pred_check_branch
          %563 = sbr.rel (%p561) target = $region40
        $region39: #{bert_classifier_forward.1} parent=11 // pred_region
          _
        $region40: #{bert_classifier_forward.1} parent=11 // pred_fallthru
          _
        // Predicated region
        $region41: #{bert_classifier_forward.1} parent=11 // pred_check
          %p564 = pneg %p507
        $region42: #{bert_classifier_forward.1} parent=11 // pred_check_branch
          %566 = sbr.rel (%p564) target = $region44
        $region43: #{bert_classifier_forward.1} parent=11 // pred_region
          _
        $region44: #{bert_classifier_forward.1} parent=11 // pred_fallthru
          _
      $region12: #{bert_classifier_forward.1} parent=5 // pred_fallthru
        _
      %p567 = scmp.lt.s32.totalorder %s27, 2
      // Predicated region
      $region45: #{bert_classifier_forward.1} parent=5 // pred_check
        %p568 = pneg %p567
      $region46: #{bert_classifier_forward.1} parent=5 // pred_check_branch
        %570 = sbr.rel (%p568) target = $region48
      $region47: #{bert_classifier_forward.1} parent=5 // pred_region
        // Predicated region
        $region49: #{bert_classifier_forward.1} parent=47 // pred_check
          %p571 = pneg %p131
        $region50: #{bert_classifier_forward.1} parent=47 // pred_check_branch
          %573 = sbr.rel (%p571) target = $region52
        $region51: #{bert_classifier_forward.1} parent=47 // pred_region
          %p574 = scmp.lt.s32.totalorder %s27, 1
          %s575 = scalar_select %p574, %s27, 1
          %s576 = smul.addr %s575, 4
          %s577 = smul.addr %s576, 4
          %s578 = scalar_lea.vmem %s4, %s577
        $region52: #{bert_classifier_forward.1} parent=47 // pred_fallthru
          _
        // Predicated region
        $region53: #{bert_classifier_forward.1} parent=47 // pred_check
          %p579 = pneg %p157
        $region54: #{bert_classifier_forward.1} parent=47 // pred_check_branch
          %581 = sbr.rel (%p579) target = $region56
        $region55: #{bert_classifier_forward.1} parent=47 // pred_region
          %p582 = scmp.lt.s32.totalorder %s27, 1
          %s583 = scalar_select %p582, %s27, 1
          %s584 = scalar_lea.vmem %s5, %s583
        $region56: #{bert_classifier_forward.1} parent=47 // pred_fallthru
          _
        // Predicated region
        $region57: #{bert_classifier_forward.1} parent=47 // pred_check
          %p585 = pneg %p183
        $region58: #{bert_classifier_forward.1} parent=47 // pred_check_branch
          %587 = sbr.rel (%p585) target = $region60
        $region59: #{bert_classifier_forward.1} parent=47 // pred_region
          %p588 = scmp.lt.s32.totalorder %s27, 1
          %s589 = scalar_select %p588, %s27, 1
          %s590 = smul.addr %s589, 4
          %s591 = smul.addr %s590, 4
          %s592 = scalar_lea.vmem %s6, %s591
        $region60: #{bert_classifier_forward.1} parent=47 // pred_fallthru
          _
        // Predicated region
        $region61: #{bert_classifier_forward.1} parent=47 // pred_check
          %p593 = pneg %p209
        $region62: #{bert_classifier_forward.1} parent=47 // pred_check_branch
          %595 = sbr.rel (%p593) target = $region64
        $region63: #{bert_classifier_forward.1} parent=47 // pred_region
          %p596 = scmp.lt.s32.totalorder %s27, 1
          %s597 = scalar_select %p596, %s27, 1
          %s598 = scalar_lea.vmem %s7, %s597
        $region64: #{bert_classifier_forward.1} parent=47 // pred_fallthru
          _
        // Predicated region
        $region65: #{bert_classifier_forward.1} parent=47 // pred_check
          %p599 = pneg %p235
        $region66: #{bert_classifier_forward.1} parent=47 // pred_check_branch
          %601 = sbr.rel (%p599) target = $region68
        $region67: #{bert_classifier_forward.1} parent=47 // pred_region
          %p602 = scmp.lt.s32.totalorder %s27, 1
          %s603 = scalar_select %p602, %s27, 1
          %s604 = scalar_lea.vmem %s8, %s603
        $region68: #{bert_classifier_forward.1} parent=47 // pred_fallthru
          _
        // Predicated region
        $region69: #{bert_classifier_forward.1} parent=47 // pred_check
          %p605 = pneg %p261
        $region70: #{bert_classifier_forward.1} parent=47 // pred_check_branch
          %607 = sbr.rel (%p605) target = $region72
        $region71: #{bert_classifier_forward.1} parent=47 // pred_region
          %p608 = scmp.lt.s32.totalorder %s27, 1
          %s609 = scalar_select %p608, %s27, 1
          %s610 = scalar_lea.vmem %s9, %s609
        $region72: #{bert_classifier_forward.1} parent=47 // pred_fallthru
          _
        // Predicated region
        $region73: #{bert_classifier_forward.1} parent=47 // pred_check
          %p611 = pneg %p287
        $region74: #{bert_classifier_forward.1} parent=47 // pred_check_branch
          %613 = sbr.rel (%p611) target = $region76
        $region75: #{bert_classifier_forward.1} parent=47 // pred_region
          %p614 = scmp.lt.s32.totalorder %s27, 1
          %s615 = scalar_select %p614, %s27, 1
          %s616 = smul.addr %s615, 4
          %s617 = smul.addr %s616, 4
          %s618 = scalar_lea.vmem %s10, %s617
        $region76: #{bert_classifier_forward.1} parent=47 // pred_fallthru
          _
        // Predicated region
        $region77: #{bert_classifier_forward.1} parent=47 // pred_check
          %p619 = pneg %p313
        $region78: #{bert_classifier_forward.1} parent=47 // pred_check_branch
          %621 = sbr.rel (%p619) target = $region80
        $region79: #{bert_classifier_forward.1} parent=47 // pred_region
          %p622 = scmp.lt.s32.totalorder %s27, 1
          %s623 = scalar_select %p622, %s27, 1
          %s624 = scalar_lea.vmem %s11, %s623
        $region80: #{bert_classifier_forward.1} parent=47 // pred_fallthru
          _
        // Predicated region
        $region81: #{bert_classifier_forward.1} parent=47 // pred_check
          %p625 = pneg %p339
        $region82: #{bert_classifier_forward.1} parent=47 // pred_check_branch
          %627 = sbr.rel (%p625) target = $region84
        $region83: #{bert_classifier_forward.1} parent=47 // pred_region
          %p628 = scmp.lt.s32.totalorder %s27, 1
          %s629 = scalar_select %p628, %s27, 1
          %s630 = smul.addr %s629, 8
          %s631 = smul.addr %s630, 4
          %s632 = scalar_lea.vmem %s12, %s631
        $region84: #{bert_classifier_forward.1} parent=47 // pred_fallthru
          _
        // Predicated region
        $region85: #{bert_classifier_forward.1} parent=47 // pred_check
          %p633 = pneg %p365
        $region86: #{bert_classifier_forward.1} parent=47 // pred_check_branch
          %635 = sbr.rel (%p633) target = $region88
        $region87: #{bert_classifier_forward.1} parent=47 // pred_region
          %p636 = scmp.lt.s32.totalorder %s27, 1
          %s637 = scalar_select %p636, %s27, 1
          %s638 = scalar_lea.vmem %s13, %s637
        $region88: #{bert_classifier_forward.1} parent=47 // pred_fallthru
          _
        // Predicated region
        $region89: #{bert_classifier_forward.1} parent=47 // pred_check
          %p639 = pneg %p391
        $region90: #{bert_classifier_forward.1} parent=47 // pred_check_branch
          %641 = sbr.rel (%p639) target = $region92
        $region91: #{bert_classifier_forward.1} parent=47 // pred_region
          %p642 = scmp.lt.s32.totalorder %s27, 1
          %s643 = scalar_select %p642, %s27, 1
          %s644 = scalar_lea.vmem %s14, %s643
        $region92: #{bert_classifier_forward.1} parent=47 // pred_fallthru
          _
        // Predicated region
        $region93: #{bert_classifier_forward.1} parent=47 // pred_check
          %p645 = pneg %p417
        $region94: #{bert_classifier_forward.1} parent=47 // pred_check_branch
          %647 = sbr.rel (%p645) target = $region96
        $region95: #{bert_classifier_forward.1} parent=47 // pred_region
          %p648 = scmp.lt.s32.totalorder %s27, 1
          %s649 = scalar_select %p648, %s27, 1
          %s650 = scalar_lea.vmem %s15, %s649
        $region96: #{bert_classifier_forward.1} parent=47 // pred_fallthru
          _
      $region48: #{bert_classifier_forward.1} parent=5 // pred_fallthru
        _
      %p651 = scmp.le.s32.totalorder 1, %s27
      %p652 = scmp.lt.s32.totalorder %s27, 3
      %p653 = pnand %p651, %p652
      %p654 = pneg %p653
      // Predicated region
      $region97: #{bert_classifier_forward.1} parent=5 // pred_check
        _
      $region98: #{bert_classifier_forward.1} parent=5 // pred_check_branch
        %656 = sbr.rel (%p653) target = $region100
      $region99: #{bert_classifier_forward.1} parent=5 // pred_region
        %s657 = ssub.s32 %s27, 1
        %p658 = pneg %p48
        %p659 = pneg %p45
        %p660 = pneg %p69
        %p661 = pneg %p66
        %p662 = pneg %p90
        %p663 = pneg %p87
        %p664 = pneg %p111
        %p665 = pneg %p108
        %p666 = scmp.lt.s32.totalorder %s32, 1
        %s667 = scalar_select %p666, %s32, 1
        %s668 = smul.addr %s667, 4
        %s669 = smul.addr %s668, 4
        %s670 = scalar_lea.vmem %s4, %s669
        %p671 = pneg %p137
        %p672 = pneg %p134
        %p673 = scmp.lt.s32.totalorder %s32, 1
        %s674 = scalar_select %p673, %s32, 1
        %s675 = scalar_lea.vmem %s5, %s674
        %p676 = pneg %p163
        %p677 = pneg %p160
        %p678 = scmp.lt.s32.totalorder %s32, 1
        %s679 = scalar_select %p678, %s32, 1
        %s680 = smul.addr %s679, 4
        %s681 = smul.addr %s680, 4
        %s682 = scalar_lea.vmem %s6, %s681
        %p683 = pneg %p189
        %p684 = pneg %p186
        %p685 = scmp.lt.s32.totalorder %s32, 1
        %s686 = scalar_select %p685, %s32, 1
        %s687 = scalar_lea.vmem %s7, %s686
        %p688 = pneg %p215
        %p689 = pneg %p212
        %p690 = scmp.lt.s32.totalorder %s32, 1
        %s691 = scalar_select %p690, %s32, 1
        %s692 = scalar_lea.vmem %s8, %s691
        %p693 = pneg %p241
        %p694 = pneg %p238
        %p695 = scmp.lt.s32.totalorder %s32, 1
        %s696 = scalar_select %p695, %s32, 1
        %s697 = scalar_lea.vmem %s9, %s696
        %p698 = pneg %p267
        %p699 = pneg %p264
        %p700 = scmp.lt.s32.totalorder %s32, 1
        %s701 = scalar_select %p700, %s32, 1
        %s702 = smul.addr %s701, 4
        %s703 = smul.addr %s702, 4
        %s704 = scalar_lea.vmem %s10, %s703
        %p705 = pneg %p293
        %p706 = pneg %p290
        %p707 = scmp.lt.s32.totalorder %s32, 1
        %s708 = scalar_select %p707, %s32, 1
        %s709 = scalar_lea.vmem %s11, %s708
        %p710 = pneg %p319
        %p711 = pneg %p316
        %p712 = scmp.lt.s32.totalorder %s32, 1
        %s713 = scalar_select %p712, %s32, 1
        %s714 = smul.addr %s713, 8
        %s715 = smul.addr %s714, 4
        %s716 = scalar_lea.vmem %s12, %s715
        %p717 = pneg %p345
        %p718 = pneg %p342
        %p719 = scmp.lt.s32.totalorder %s32, 1
        %s720 = scalar_select %p719, %s32, 1
        %s721 = scalar_lea.vmem %s13, %s720
        %p722 = pneg %p371
        %p723 = pneg %p368
        %p724 = scmp.lt.s32.totalorder %s32, 1
        %s725 = scalar_select %p724, %s32, 1
        %s726 = scalar_lea.vmem %s14, %s725
        %p727 = pneg %p397
        %p728 = pneg %p394
        %p729 = scmp.lt.s32.totalorder %s32, 1
        %s730 = scalar_select %p729, %s32, 1
        %s731 = scalar_lea.vmem %s15, %s730
        %p732 = pneg %p423
        %p733 = pneg %p420
        %p734 = pneg %p444
        %p735 = pneg %p441
        %p736 = pneg %p465
        %p737 = pneg %p462
        %p738 = pneg %p486
        %p739 = pneg %p483
        %p740 = pneg %p507
        %p741 = pneg %p504
        %p742 = pneg %p528
        %p743 = pneg %p525
        %p744 = scmp.lt.s32.totalorder %s32, 1
        %s745 = scalar_select %p744, %s32, 1
        %s746 = smul.addr %s745, 4
        %s747 = smul.addr %s746, 4
        %s748 = scalar_lea.vmem %s4, %s747
        %p749 = scmp.lt.s32.totalorder %s32, 1
        %s750 = scalar_select %p749, %s32, 1
        %s751 = scalar_lea.vmem %s5, %s750
        %p752 = scmp.lt.s32.totalorder %s32, 1
        %s753 = scalar_select %p752, %s32, 1
        %s754 = smul.addr %s753, 4
        %s755 = smul.addr %s754, 4
        %s756 = scalar_lea.vmem %s6, %s755
        %p757 = scmp.lt.s32.totalorder %s32, 1
        %s758 = scalar_select %p757, %s32, 1
        %s759 = scalar_lea.vmem %s7, %s758
        %p760 = scmp.lt.s32.totalorder %s32, 1
        %s761 = scalar_select %p760, %s32, 1
        %s762 = scalar_lea.vmem %s8, %s761
        %p763 = scmp.lt.s32.totalorder %s32, 1
        %s764 = scalar_select %p763, %s32, 1
        %s765 = scalar_lea.vmem %s9, %s764
        %p766 = scmp.lt.s32.totalorder %s32, 1
        %s767 = scalar_select %p766, %s32, 1
        %s768 = smul.addr %s767, 4
        %s769 = smul.addr %s768, 4
        %s770 = scalar_lea.vmem %s10, %s769
        %p771 = scmp.lt.s32.totalorder %s32, 1
        %s772 = scalar_select %p771, %s32, 1
        %s773 = scalar_lea.vmem %s11, %s772
        %p774 = scmp.lt.s32.totalorder %s32, 1
        %s775 = scalar_select %p774, %s32, 1
        %s776 = smul.addr %s775, 8
        %s777 = smul.addr %s776, 4
        %s778 = scalar_lea.vmem %s12, %s777
        %p779 = scmp.lt.s32.totalorder %s32, 1
        %s780 = scalar_select %p779, %s32, 1
        %s781 = scalar_lea.vmem %s13, %s780
        %p782 = scmp.lt.s32.totalorder %s32, 1
        %s783 = scalar_select %p782, %s32, 1
        %s784 = scalar_lea.vmem %s14, %s783
        %p785 = scmp.lt.s32.totalorder %s32, 1
        %s786 = scalar_select %p785, %s32, 1
        %s787 = scalar_lea.vmem %s15, %s786
        %p789 = scmp.eq.s32.totalorder %s32, 0
        // Predicated region
        $region101: #{bert_classifier_forward.1} parent=99 // pred_check
          %p790 = pneg %p789
        $region102: #{bert_classifier_forward.1} parent=99 // pred_check_branch
          %792 = sbr.rel (%p790) target = $region104
        $region103: #{bert_classifier_forward.1} parent=99 // pred_region
          %v793 = vld [vmem:[%s0] sm:$0xff]
          %v794 = vld [vmem:[%s0 + $0x8] sm:$0xff]
          %v795 = vld [vmem:[%s2] sm:$0x1]
          %v796 = vld [vmem:[%s3] sm:$0x1]
          %vm797 = vcmask 261120
          %v798 = vsel %vm797, %v793, 0.0
          %799 = vadd.xlane.f32.xlu0 %v798
          %v800 = vpop.xlane.xlu0 %799
          %v801 = vsel %vm797, %v794, 0.0
          %802 = vadd.xlane.f32.xlu0 %v801
          %v803 = vpop.xlane.xlu0 %802
          %v804 = vrcp.pop 32.0
          %v805 = vmul.f32 %v800, %v804
          %v806 = vmul.f32 %v803, %v804
          %v807 = vsub.f32 %v793, %v805
          %v808 = vsub.f32 %v794, %v806
          %v809 = vmul.f32 %v807, %v807
          %v810 = vmul.f32 %v808, %v808
          %v811 = vsel %vm797, %v809, 0.0
          %812 = vadd.xlane.f32.xlu0 %v811
          %v813 = vpop.xlane.xlu0 %812
          %v814 = vsel %vm797, %v810, 0.0
          %815 = vadd.xlane.f32.xlu0 %v814
          %v816 = vpop.xlane.xlu0 %815
          %v817 = vmul.f32 %v813, %v804
          %v818 = vmul.f32 %v816, %v804
          %v819 = vadd.f32 %v817, 1e-12
          %v820 = vadd.f32 %v818, 1e-12
          %v821 = vrsqrt.pop %v819
          %v822 = vrsqrt.pop %v820
          %v823 = vmul.f32 %v807, %v821
          %v824 = vmul.f32 %v808, %v822
          %v826 = vlaneseq
          %v827 = vshrl.u32 %v826, 7
          %v828 = vsub.s32 0, %v827
          %v829 = vrot.slane %v795, %v828
          %v831 = vmul.f32 %v823, %v829
          %v832 = vmul.f32 %v824, %v829
          %v834 = vlaneseq
          %v835 = vshrl.u32 %v834, 7
          %v836 = vsub.s32 0, %v835
          %v837 = vrot.slane %v796, %v836
          %v839 = vadd.f32 %v831, %v837
          %v840 = vadd.f32 %v832, %v837
          %841 = vst.msk [vmem:[#allocation2] sm:$0xff] %vm797, %v839
          %842 = vst.msk [vmem:[#allocation2 + $0x8] sm:$0xff] %vm797, %v840
        $region104: #{bert_classifier_forward.1} parent=99 // pred_fallthru
          _
        %v843 = vld [vmem:[#allocation2] sm:$0xff]
        %v844 = vld [vmem:[#allocation2 + $0x8] sm:$0xff]
        %v845 = vpack.c.bf16 %v844, %v843
        %v846 = vld [vmem:[%s1] sm:$0xff]
        %v847 = vld [vmem:[%s1 + $0x8] sm:$0xff]
        %v848 = vld [vmem:[%s748] sm:$0xf]
        %v849 = vld [vmem:[%s748 + $0x4] sm:$0xf]
        %v850 = vld [vmem:[%s748 + $0x8] sm:$0xf]
        %v851 = vld [vmem:[%s748 + $0xc] sm:$0xf]
        %v852 = vld [vmem:[%s751] sm:$0x1]
        %v854 = vlaneseq
        %v855 = vshrl.u32 %v854, 7
        %v856 = vsub.s32 0, %v855
        %v857 = vrot.slane %v852, %v856
        %v863 = vunpack.c.l.b16 %v848
        %v864 = vunpack.c.l.b16 %v849
        %v865 = vunpack.c.l.b16 %v850
        %v866 = vunpack.c.l.b16 %v851
        %v867 = vpack.c.b16 %v864, %v863
        %v868 = vpack.c.b16 %v866, %v865
        %vm871 = vcmask 261120
        %v873 = vsel %vm871, %v845, 0
        %875 = vmatprep.subr.bf16.mxu0 0
        %876 = vmatpush1.bf16.msra.mxu0 0
        %877 = vmatprep.subr.bf16.mxu0 0
        %878 = vmatpush1.bf16.msra.mxu0 0
        %879 = vmatprep.subr.bf16.mxu0 0
        %880 = vmatpush1.bf16.msra.mxu0 0
        %881 = vmatprep.subr.bf16.mxu0 0
        %882 = vmatpush1.bf16.msra.mxu0 0
        %883 = vmatprep.subr.bf16.mxu0 0
        %884 = vmatpush1.bf16.msra.mxu0 0
        %885 = vmatprep.subr.bf16.mxu0 0
        %886 = vmatpush1.bf16.msra.mxu0 0
        %887 = vmatprep.subr.bf16.mxu0 0
        %888 = vmatpush1.bf16.msra.mxu0 %v868
        %889 = vmatprep.subr.bf16.mxu0 0
        %890 = vmatpush1.bf16.msra.mxu0 %v867
        %891 = vmatprep.subr.bf16.mxu0 0
        %892 = vmatpush2.bf16.msra.mxu0 0
        %893 = vmatprep.subr.bf16.mxu0 0
        %894 = vmatpush2.bf16.msra.mxu0 0
        %895 = vmatprep.subr.bf16.mxu0 0
        %896 = vmatpush2.bf16.msra.mxu0 0
        %897 = vmatprep.subr.bf16.mxu0 0
        %898 = vmatpush2.bf16.msra.mxu0 0
        %899 = vmatprep.subr.bf16.mxu0 0
        %900 = vmatpush2.bf16.msra.mxu0 0
        %901 = vmatprep.subr.bf16.mxu0 0
        %902 = vmatpush2.bf16.msra.mxu0 0
        %903 = vmatprep.subr.bf16.mxu0 0
        %904 = vmatpush2.bf16.msra.mxu0 0
        %905 = vmatprep.subr.bf16.mxu0 0
        %906 = vmatpush2.bf16.msra.mxu0 0
        %907 = vmatprep.mubr.bf16.mxu0 0
        %908 = vmatmul.mubr.bf16.gmra.mxu0 %v873
        %v909 = vpop.f32.mrf.mxu0
        %v910 = vadd.f32 %v857, %v909
        %v911 = vpop.f32.mrf.mxu0
        %v912 = vpop.f32.mrf.mxu0
        %v913 = vadd.f32 %v857, %v912
        %v914 = vpop.f32.mrf.mxu0
        %915 = vdwg.mxu0
        %v916 = vpack.c.bf16 %v910, %v910
        %v917 = vpack.c.bf16 %v913, %v913
        %919 = vrot.lane.b32.xlu0 %v916, 96
        %v920 = vpop.permute.xlu0 %919
        %vm921 = vcmask 130048
        %v923 = vsel %vm921, %v916, 0
        %v926 = vsel %vm921, %v920, 0
        %928 = vmatprep.subr.bf16.mxu0 0
        %929 = vmatpush1.bf16.xpose.msra.mxu0 0
        %930 = vmatprep.subr.bf16.mxu0 0
        %931 = vmatpush1.bf16.xpose.msra.mxu0 0
        %932 = vmatprep.subr.bf16.mxu0 0
        %933 = vmatpush1.bf16.xpose.msra.mxu0 0
        %934 = vmatprep.subr.bf16.mxu0 0
        %935 = vmatpush1.bf16.xpose.msra.mxu0 0
        %936 = vmatprep.subr.bf16.mxu0 0
        %937 = vmatpush1.bf16.xpose.msra.mxu0 0
        %938 = vmatprep.subr.bf16.mxu0 0
        %939 = vmatpush1.bf16.xpose.msra.mxu0 0
        %940 = vmatprep.subr.bf16.mxu0 0
        %941 = vmatpush1.bf16.xpose.msra.mxu0 0
        %942 = vmatprep.subr.bf16.mxu0 0
        %943 = vmatpush1.bf16.xpose.msra.mxu0 %v926
        %944 = vmatprep.subr.bf16.mxu0 0
        %945 = vmatpush2.bf16.xpose.msra.mxu0 0
        %946 = vmatprep.subr.bf16.mxu0 0
        %947 = vmatpush2.bf16.xpose.msra.mxu0 0
        %948 = vmatprep.subr.bf16.mxu0 0
        %949 = vmatpush2.bf16.xpose.msra.mxu0 0
        %950 = vmatprep.subr.bf16.mxu0 0
        %951 = vmatpush2.bf16.xpose.msra.mxu0 0
        %952 = vmatprep.subr.bf16.mxu0 0
        %953 = vmatpush2.bf16.xpose.msra.mxu0 0
        %954 = vmatprep.subr.bf16.mxu0 0
        %955 = vmatpush2.bf16.xpose.msra.mxu0 0
        %956 = vmatprep.subr.bf16.mxu0 0
        %957 = vmatpush2.bf16.xpose.msra.mxu0 0
        %958 = vmatprep.subr.bf16.mxu0 0
        %959 = vmatpush2.bf16.xpose.msra.mxu0 0
        %960 = vmatprep.mubr.bf16.mxu0 0
        %961 = vmatmul.mubr.bf16.gmra.mxu0 %v923
        %v962 = vpop.f32.mrf.mxu0
        %v963 = vadd.f32 0.0, %v962
        %v964 = vpop.f32.mrf.mxu0
        %v965 = vpop.f32.mrf.mxu0
        %v966 = vpop.f32.mrf.mxu0
        %967 = vdwg.mxu0
        %969 = vrot.lane.b32.xlu0 %v917, 96
        %v970 = vpop.permute.xlu0 %969
        %v972 = vsel %vm921, %v917, 0
        %v975 = vsel %vm921, %v970, 0
        %977 = vmatprep.subr.bf16.mxu0 0
        %978 = vmatpush1.bf16.xpose.msra.mxu0 0
        %979 = vmatprep.subr.bf16.mxu0 0
        %980 = vmatpush1.bf16.xpose.msra.mxu0 0
        %981 = vmatprep.subr.bf16.mxu0 0
        %982 = vmatpush1.bf16.xpose.msra.mxu0 0
        %983 = vmatprep.subr.bf16.mxu0 0
        %984 = vmatpush1.bf16.xpose.msra.mxu0 0
        %985 = vmatprep.subr.bf16.mxu0 0
        %986 = vmatpush1.bf16.xpose.msra.mxu0 0
        %987 = vmatprep.subr.bf16.mxu0 0
        %988 = vmatpush1.bf16.xpose.msra.mxu0 0
        %989 = vmatprep.subr.bf16.mxu0 0
        %990 = vmatpush1.bf16.xpose.msra.mxu0 0
        %991 = vmatprep.subr.bf16.mxu0 0
        %992 = vmatpush1.bf16.xpose.msra.mxu0 %v975
        %993 = vmatprep.subr.bf16.mxu0 0
        %994 = vmatpush2.bf16.xpose.msra.mxu0 0
        %995 = vmatprep.subr.bf16.mxu0 0
        %996 = vmatpush2.bf16.xpose.msra.mxu0 0
        %997 = vmatprep.subr.bf16.mxu0 0
        %998 = vmatpush2.bf16.xpose.msra.mxu0 0
        %999 = vmatprep.subr.bf16.mxu0 0
        %1000 = vmatpush2.bf16.xpose.msra.mxu0 0
        %1001 = vmatprep.subr.bf16.mxu0 0
        %1002 = vmatpush2.bf16.xpose.msra.mxu0 0
        %1003 = vmatprep.subr.bf16.mxu0 0
        %1004 = vmatpush2.bf16.xpose.msra.mxu0 0
        %1005 = vmatprep.subr.bf16.mxu0 0
        %1006 = vmatpush2.bf16.xpose.msra.mxu0 0
        %1007 = vmatprep.subr.bf16.mxu0 0
        %1008 = vmatpush2.bf16.xpose.msra.mxu0 0
        %1009 = vmatprep.mubr.bf16.mxu0 0
        %1010 = vmatmul.mubr.bf16.gmra.mxu0 %v972
        %v1011 = vpop.f32.mrf.mxu0
        %v1012 = vadd.f32 0.0, %v1011
        %v1013 = vpop.f32.mrf.mxu0
        %v1014 = vpop.f32.mrf.mxu0
        %v1015 = vpop.f32.mrf.mxu0
        %1016 = vdwg.mxu0
        %v1017 = vmul.f32 %v963, 0.25
        %v1018 = vmul.f32 %v1012, 0.25
        %v1019 = vadd.f32 %v1017, %v846
        %v1020 = vadd.f32 %v1018, %v847
        %vm1021 = vcmask 64512
        %v1022 = vsel %vm1021, %v1019, -inf
        %1023 = vmax.xlane.f32.xlu0 %v1022
        %v1024 = vpop.xlane.xlu0 %1023
        %v1025 = vsel %vm1021, %v1020, -inf
        %1026 = vmax.xlane.f32.xlu0 %v1025
        %v1027 = vpop.xlane.xlu0 %1026
        %v1028 = vsub.f32 %v1019, %v1024
        %v1029 = vsub.f32 %v1020, %v1027
        %v1030 = vmul.f32 %v1028, 1.442695
        %v1031 = vpow.pop %v1030
        %v1032 = vmul.f32 %v1029, 1.442695
        %v1033 = vpow.pop %v1032
        %v1034 = vsel %vm1021, %v1031, 0.0
        %1035 = vadd.xlane.f32.xlu0 %v1034
        %v1036 = vpop.xlane.xlu0 %1035
        %v1037 = vsel %vm1021, %v1033, 0.0
        %1038 = vadd.xlane.f32.xlu0 %v1037
        %v1039 = vpop.xlane.xlu0 %1038
        %v1040 = vrcp.pop %v1036
        %v1041 = vrcp.pop %v1039
        %v1042 = vmul.f32 %v1031, %v1040
        %v1043 = vmul.f32 %v1033, %v1041
        %v1044 = vpack.c.bf16 %v1042, %v1042
        %v1045 = vpack.c.bf16 %v1043, %v1043
        %1046 = vrot.lane.b32.xlu0 %v916, 64
        %v1047 = vpop.permute.xlu0 %1046
        %v1049 = vsel %vm1021, %v1044, 0
        %vm1051 = vcmask 1043456
        %v1053 = vsel %vm1051, %v1047, 0
        %1055 = vmatprep.subr.bf16.mxu0 0
        %1056 = vmatpush1.bf16.msra.mxu0 0
        %1057 = vmatprep.subr.bf16.mxu0 0
        %1058 = vmatpush1.bf16.msra.mxu0 0
        %1059 = vmatprep.subr.bf16.mxu0 0
        %1060 = vmatpush1.bf16.msra.mxu0 0
        %1061 = vmatprep.subr.bf16.mxu0 0
        %1062 = vmatpush1.bf16.msra.mxu0 0
        %1063 = vmatprep.subr.bf16.mxu0 0
        %1064 = vmatpush1.bf16.msra.mxu0 0
        %1065 = vmatprep.subr.bf16.mxu0 0
        %1066 = vmatpush1.bf16.msra.mxu0 0
        %1067 = vmatprep.subr.bf16.mxu0 0
        %1068 = vmatpush1.bf16.msra.mxu0 0
        %1069 = vmatprep.subr.bf16.mxu0 0
        %1070 = vmatpush1.bf16.msra.mxu0 %v1053
        %1071 = vmatprep.subr.bf16.mxu0 0
        %1072 = vmatpush2.bf16.msra.mxu0 0
        %1073 = vmatprep.subr.bf16.mxu0 0
        %1074 = vmatpush2.bf16.msra.mxu0 0
        %1075 = vmatprep.subr.bf16.mxu0 0
        %1076 = vmatpush2.bf16.msra.mxu0 0
        %1077 = vmatprep.subr.bf16.mxu0 0
        %1078 = vmatpush2.bf16.msra.mxu0 0
        %1079 = vmatprep.subr.bf16.mxu0 0
        %1080 = vmatpush2.bf16.msra.mxu0 0
        %1081 = vmatprep.subr.bf16.mxu0 0
        %1082 = vmatpush2.bf16.msra.mxu0 0
        %1083 = vmatprep.subr.bf16.mxu0 0
        %1084 = vmatpush2.bf16.msra.mxu0 0
        %1085 = vmatprep.subr.bf16.mxu0 0
        %1086 = vmatpush2.bf16.msra.mxu0 0
        %1087 = vmatprep.mubr.bf16.mxu0 0
        %1088 = vmatmul.mubr.bf16.gmra.mxu0 %v1049
        %v1089 = vpop.f32.mrf.mxu0
        %v1090 = vadd.f32 0.0, %v1089
        %v1091 = vpop.f32.mrf.mxu0
        %v1092 = vpop.f32.mrf.mxu0
        %v1093 = vpop.f32.mrf.mxu0
        %1094 = vdwg.mxu0
        %1095 = vrot.lane.b32.xlu0 %v917, 64
        %v1096 = vpop.permute.xlu0 %1095
        %v1098 = vsel %vm1021, %v1045, 0
        %v1101 = vsel %vm1051, %v1096, 0
        %1103 = vmatprep.subr.bf16.mxu0 0
        %1104 = vmatpush1.bf16.msra.mxu0 0
        %1105 = vmatprep.subr.bf16.mxu0 0
        %1106 = vmatpush1.bf16.msra.mxu0 0
        %1107 = vmatprep.subr.bf16.mxu0 0
        %1108 = vmatpush1.bf16.msra.mxu0 0
        %1109 = vmatprep.subr.bf16.mxu0 0
        %1110 = vmatpush1.bf16.msra.mxu0 0
        %1111 = vmatprep.subr.bf16.mxu0 0
        %1112 = vmatpush1.bf16.msra.mxu0 0
        %1113 = vmatprep.subr.bf16.mxu0 0
        %1114 = vmatpush1.bf16.msra.mxu0 0
        %1115 = vmatprep.subr.bf16.mxu0 0
        %1116 = vmatpush1.bf16.msra.mxu0 0
        %1117 = vmatprep.subr.bf16.mxu0 0
        %1118 = vmatpush1.bf16.msra.mxu0 %v1101
        %1119 = vmatprep.subr.bf16.mxu0 0
        %1120 = vmatpush2.bf16.msra.mxu0 0
        %1121 = vmatprep.subr.bf16.mxu0 0
        %1122 = vmatpush2.bf16.msra.mxu0 0
        %1123 = vmatprep.subr.bf16.mxu0 0
        %1124 = vmatpush2.bf16.msra.mxu0 0
        %1125 = vmatprep.subr.bf16.mxu0 0
        %1126 = vmatpush2.bf16.msra.mxu0 0
        %1127 = vmatprep.subr.bf16.mxu0 0
        %1128 = vmatpush2.bf16.msra.mxu0 0
        %1129 = vmatprep.subr.bf16.mxu0 0
        %1130 = vmatpush2.bf16.msra.mxu0 0
        %1131 = vmatprep.subr.bf16.mxu0 0
        %1132 = vmatpush2.bf16.msra.mxu0 0
        %1133 = vmatprep.subr.bf16.mxu0 0
        %1134 = vmatpush2.bf16.msra.mxu0 0
        %1135 = vmatprep.mubr.bf16.mxu0 0
        %1136 = vmatmul.mubr.bf16.gmra.mxu0 %v1098
        %v1137 = vpop.f32.mrf.mxu0
        %v1138 = vadd.f32 0.0, %v1137
        %v1139 = vpop.f32.mrf.mxu0
        %v1140 = vpop.f32.mrf.mxu0
        %v1141 = vpop.f32.mrf.mxu0
        %1142 = vdwg.mxu0
        %1143 = vrot.lane.b32.xlu0 %v916, 112
        %v1144 = vpop.permute.xlu0 %1143
        %1145 = vrot.lane.b32.xlu0 %v916, 80
        %v1146 = vpop.permute.xlu0 %1145
        %v1148 = vsel %vm921, %v1144, 0
        %v1151 = vsel %vm921, %v1146, 0
        %1153 = vmatprep.subr.bf16.mxu0 0
        %1154 = vmatpush1.bf16.xpose.msra.mxu0 0
        %1155 = vmatprep.subr.bf16.mxu0 0
        %1156 = vmatpush1.bf16.xpose.msra.mxu0 0
        %1157 = vmatprep.subr.bf16.mxu0 0
        %1158 = vmatpush1.bf16.xpose.msra.mxu0 0
        %1159 = vmatprep.subr.bf16.mxu0 0
        %1160 = vmatpush1.bf16.xpose.msra.mxu0 0
        %1161 = vmatprep.subr.bf16.mxu0 0
        %1162 = vmatpush1.bf16.xpose.msra.mxu0 0
        %1163 = vmatprep.subr.bf16.mxu0 0
        %1164 = vmatpush1.bf16.xpose.msra.mxu0 0
        %1165 = vmatprep.subr.bf16.mxu0 0
        %1166 = vmatpush1.bf16.xpose.msra.mxu0 0
        %1167 = vmatprep.subr.bf16.mxu0 0
        %1168 = vmatpush1.bf16.xpose.msra.mxu0 %v1151
        %1169 = vmatprep.subr.bf16.mxu0 0
        %1170 = vmatpush2.bf16.xpose.msra.mxu0 0
        %1171 = vmatprep.subr.bf16.mxu0 0
        %1172 = vmatpush2.bf16.xpose.msra.mxu0 0
        %1173 = vmatprep.subr.bf16.mxu0 0
        %1174 = vmatpush2.bf16.xpose.msra.mxu0 0
        %1175 = vmatprep.subr.bf16.mxu0 0
        %1176 = vmatpush2.bf16.xpose.msra.mxu0 0
        %1177 = vmatprep.subr.bf16.mxu0 0
        %1178 = vmatpush2.bf16.xpose.msra.mxu0 0
        %1179 = vmatprep.subr.bf16.mxu0 0
        %1180 = vmatpush2.bf16.xpose.msra.mxu0 0
        %1181 = vmatprep.subr.bf16.mxu0 0
        %1182 = vmatpush2.bf16.xpose.msra.mxu0 0
        %1183 = vmatprep.subr.bf16.mxu0 0
        %1184 = vmatpush2.bf16.xpose.msra.mxu0 0
        %1185 = vmatprep.mubr.bf16.mxu0 0
        %1186 = vmatmul.mubr.bf16.gmra.mxu0 %v1148
        %v1187 = vpop.f32.mrf.mxu0
        %v1188 = vadd.f32 0.0, %v1187
        %v1189 = vpop.f32.mrf.mxu0
        %v1190 = vpop.f32.mrf.mxu0
        %v1191 = vpop.f32.mrf.mxu0
        %1192 = vdwg.mxu0
        %1193 = vrot.lane.b32.xlu0 %v917, 112
        %v1194 = vpop.permute.xlu0 %1193
        %1195 = vrot.lane.b32.xlu0 %v917, 80
        %v1196 = vpop.permute.xlu0 %1195
        %v1198 = vsel %vm921, %v1194, 0
        %v1201 = vsel %vm921, %v1196, 0
        %1203 = vmatprep.subr.bf16.mxu0 0
        %1204 = vmatpush1.bf16.xpose.msra.mxu0 0
        %1205 = vmatprep.subr.bf16.mxu0 0
        %1206 = vmatpush1.bf16.xpose.msra.mxu0 0
        %1207 = vmatprep.subr.bf16.mxu0 0
        %1208 = vmatpush1.bf16.xpose.msra.mxu0 0
        %1209 = vmatprep.subr.bf16.mxu0 0
        %1210 = vmatpush1.bf16.xpose.msra.mxu0 0
        %1211 = vmatprep.subr.bf16.mxu0 0
        %1212 = vmatpush1.bf16.xpose.msra.mxu0 0
        %1213 = vmatprep.subr.bf16.mxu0 0
        %1214 = vmatpush1.bf16.xpose.msra.mxu0 0
        %1215 = vmatprep.subr.bf16.mxu0 0
        %1216 = vmatpush1.bf16.xpose.msra.mxu0 0
        %1217 = vmatprep.subr.bf16.mxu0 0
        %1218 = vmatpush1.bf16.xpose.msra.mxu0 %v1201
        %1219 = vmatprep.subr.bf16.mxu0 0
        %1220 = vmatpush2.bf16.xpose.msra.mxu0 0
        %1221 = vmatprep.subr.bf16.mxu0 0
        %1222 = vmatpush2.bf16.xpose.msra.mxu0 0
        %1223 = vmatprep.subr.bf16.mxu0 0
        %1224 = vmatpush2.bf16.xpose.msra.mxu0 0
        %1225 = vmatprep.subr.bf16.mxu0 0
        %1226 = vmatpush2.bf16.xpose.msra.mxu0 0
        %1227 = vmatprep.subr.bf16.mxu0 0
        %1228 = vmatpush2.bf16.xpose.msra.mxu0 0
        %1229 = vmatprep.subr.bf16.mxu0 0
        %1230 = vmatpush2.bf16.xpose.msra.mxu0 0
        %1231 = vmatprep.subr.bf16.mxu0 0
        %1232 = vmatpush2.bf16.xpose.msra.mxu0 0
        %1233 = vmatprep.subr.bf16.mxu0 0
        %1234 = vmatpush2.bf16.xpose.msra.mxu0 0
        %1235 = vmatprep.mubr.bf16.mxu0 0
        %1236 = vmatmul.mubr.bf16.gmra.mxu0 %v1198
        %v1237 = vpop.f32.mrf.mxu0
        %v1238 = vadd.f32 0.0, %v1237
        %v1239 = vpop.f32.mrf.mxu0
        %v1240 = vpop.f32.mrf.mxu0
        %v1241 = vpop.f32.mrf.mxu0
        %1242 = vdwg.mxu0
        %v1243 = vmul.f32 %v1188, 0.25
        %v1244 = vmul.f32 %v1238, 0.25
        %v1245 = vadd.f32 %v1243, %v846
        %v1246 = vadd.f32 %v1244, %v847
        %v1247 = vsel %vm1021, %v1245, -inf
        %1248 = vmax.xlane.f32.xlu0 %v1247
        %v1249 = vpop.xlane.xlu0 %1248
        %v1250 = vsel %vm1021, %v1246, -inf
        %1251 = vmax.xlane.f32.xlu0 %v1250
        %v1252 = vpop.xlane.xlu0 %1251
        %v1253 = vsub.f32 %v1245, %v1249
        %v1254 = vsub.f32 %v1246, %v1252
        %v1255 = vmul.f32 %v1253, 1.442695
        %v1256 = vpow.pop %v1255
        %v1257 = vmul.f32 %v1254, 1.442695
        %v1258 = vpow.pop %v1257
        %v1259 = vsel %vm1021, %v1256, 0.0
        %1260 = vadd.xlane.f32.xlu0 %v1259
        %v1261 = vpop.xlane.xlu0 %1260
        %v1262 = vsel %vm1021, %v1258, 0.0
        %1263 = vadd.xlane.f32.xlu0 %v1262
        %v1264 = vpop.xlane.xlu0 %1263
        %v1265 = vrcp.pop %v1261
        %v1266 = vrcp.pop %v1264
        %v1267 = vmul.f32 %v1256, %v1265
        %v1268 = vmul.f32 %v1258, %v1266
        %v1269 = vpack.c.bf16 %v1267, %v1267
        %v1270 = vpack.c.bf16 %v1268, %v1268
        %1271 = vrot.lane.b32.xlu0 %v916, 48
        %v1272 = vpop.permute.xlu0 %1271
        %v1274 = vsel %vm1021, %v1269, 0
        %v1277 = vsel %vm1051, %v1272, 0
        %1279 = vmatprep.subr.bf16.mxu0 0
        %1280 = vmatpush1.bf16.msra.mxu0 0
        %1281 = vmatprep.subr.bf16.mxu0 0
        %1282 = vmatpush1.bf16.msra.mxu0 0
        %1283 = vmatprep.subr.bf16.mxu0 0
        %1284 = vmatpush1.bf16.msra.mxu0 0
        %1285 = vmatprep.subr.bf16.mxu0 0
        %1286 = vmatpush1.bf16.msra.mxu0 0
        %1287 = vmatprep.subr.bf16.mxu0 0
        %1288 = vmatpush1.bf16.msra.mxu0 0
        %1289 = vmatprep.subr.bf16.mxu0 0
        %1290 = vmatpush1.bf16.msra.mxu0 0
        %1291 = vmatprep.subr.bf16.mxu0 0
        %1292 = vmatpush1.bf16.msra.mxu0 0
        %1293 = vmatprep.subr.bf16.mxu0 0
        %1294 = vmatpush1.bf16.msra.mxu0 %v1277
        %1295 = vmatprep.subr.bf16.mxu0 0
        %1296 = vmatpush2.bf16.msra.mxu0 0
        %1297 = vmatprep.subr.bf16.mxu0 0
        %1298 = vmatpush2.bf16.msra.mxu0 0
        %1299 = vmatprep.subr.bf16.mxu0 0
        %1300 = vmatpush2.bf16.msra.mxu0 0
        %1301 = vmatprep.subr.bf16.mxu0 0
        %1302 = vmatpush2.bf16.msra.mxu0 0
        %1303 = vmatprep.subr.bf16.mxu0 0
        %1304 = vmatpush2.bf16.msra.mxu0 0
        %1305 = vmatprep.subr.bf16.mxu0 0
        %1306 = vmatpush2.bf16.msra.mxu0 0
        %1307 = vmatprep.subr.bf16.mxu0 0
        %1308 = vmatpush2.bf16.msra.mxu0 0
        %1309 = vmatprep.subr.bf16.mxu0 0
        %1310 = vmatpush2.bf16.msra.mxu0 0
        %1311 = vmatprep.mubr.bf16.mxu0 0
        %1312 = vmatmul.mubr.bf16.gmra.mxu0 %v1274
        %v1313 = vpop.f32.mrf.mxu0
        %v1314 = vadd.f32 0.0, %v1313
        %v1315 = vpop.f32.mrf.mxu0
        %v1316 = vpop.f32.mrf.mxu0
        %v1317 = vpop.f32.mrf.mxu0
        %1318 = vdwg.mxu0
        %1319 = vrot.lane.b32.xlu0 %v917, 48
        %v1320 = vpop.permute.xlu0 %1319
        %v1322 = vsel %vm1021, %v1270, 0
        %v1325 = vsel %vm1051, %v1320, 0
        %1327 = vmatprep.subr.bf16.mxu0 0
        %1328 = vmatpush1.bf16.msra.mxu0 0
        %1329 = vmatprep.subr.bf16.mxu0 0
        %1330 = vmatpush1.bf16.msra.mxu0 0
        %1331 = vmatprep.subr.bf16.mxu0 0
        %1332 = vmatpush1.bf16.msra.mxu0 0
        %1333 = vmatprep.subr.bf16.mxu0 0
        %1334 = vmatpush1.bf16.msra.mxu0 0
        %1335 = vmatprep.subr.bf16.mxu0 0
        %1336 = vmatpush1.bf16.msra.mxu0 0
        %1337 = vmatprep.subr.bf16.mxu0 0
        %1338 = vmatpush1.bf16.msra.mxu0 0
        %1339 = vmatprep.subr.bf16.mxu0 0
        %1340 = vmatpush1.bf16.msra.mxu0 0
        %1341 = vmatprep.subr.bf16.mxu0 0
        %1342 = vmatpush1.bf16.msra.mxu0 %v1325
        %1343 = vmatprep.subr.bf16.mxu0 0
        %1344 = vmatpush2.bf16.msra.mxu0 0
        %1345 = vmatprep.subr.bf16.mxu0 0
        %1346 = vmatpush2.bf16.msra.mxu0 0
        %1347 = vmatprep.subr.bf16.mxu0 0
        %1348 = vmatpush2.bf16.msra.mxu0 0
        %1349 = vmatprep.subr.bf16.mxu0 0
        %1350 = vmatpush2.bf16.msra.mxu0 0
        %1351 = vmatprep.subr.bf16.mxu0 0
        %1352 = vmatpush2.bf16.msra.mxu0 0
        %1353 = vmatprep.subr.bf16.mxu0 0
        %1354 = vmatpush2.bf16.msra.mxu0 0
        %1355 = vmatprep.subr.bf16.mxu0 0
        %1356 = vmatpush2.bf16.msra.mxu0 0
        %1357 = vmatprep.subr.bf16.mxu0 0
        %1358 = vmatpush2.bf16.msra.mxu0 0
        %1359 = vmatprep.mubr.bf16.mxu0 0
        %1360 = vmatmul.mubr.bf16.gmra.mxu0 %v1322
        %v1361 = vpop.f32.mrf.mxu0
        %v1362 = vadd.f32 0.0, %v1361
        %v1363 = vpop.f32.mrf.mxu0
        %v1364 = vpop.f32.mrf.mxu0
        %v1365 = vpop.f32.mrf.mxu0
        %1366 = vdwg.mxu0
        %1369 = vrot.lane.b32.xlu0 %v1314, 16
        %v1370 = vpop.permute.xlu0 %1369
        %1371 = vrot.lane.b32.xlu0 %v1362, 16
        %v1372 = vpop.permute.xlu0 %1371
        %v1375 = vsel %vm921, %v1090, %v1370
        %v1376 = vsel %vm921, %v1138, %v1372
        %v1377 = vpack.c.bf16 %v1376, %v1375
        %v1378 = vld [vmem:[%s756] sm:$0xf]
        %v1379 = vld [vmem:[%s756 + $0x4] sm:$0xf]
        %v1380 = vld [vmem:[%s756 + $0x8] sm:$0xf]
        %v1381 = vld [vmem:[%s756 + $0xc] sm:$0xf]
        %v1382 = vld [vmem:[%s759] sm:$0x1]
        %v1384 = vlaneseq
        %v1385 = vshrl.u32 %v1384, 7
        %v1386 = vsub.s32 0, %v1385
        %v1387 = vrot.slane %v1382, %v1386
        %v1393 = vunpack.c.l.b16 %v1378
        %v1394 = vunpack.c.l.b16 %v1379
        %v1395 = vunpack.c.l.b16 %v1380
        %v1396 = vunpack.c.l.b16 %v1381
        %v1397 = vpack.c.b16 %v1394, %v1393
        %v1398 = vpack.c.b16 %v1396, %v1395
        %v1402 = vsel %vm871, %v1377, 0
        %1404 = vmatprep.subr.bf16.mxu0 0
        %1405 = vmatpush1.bf16.msra.mxu0 0
        %1406 = vmatprep.subr.bf16.mxu0 0
        %1407 = vmatpush1.bf16.msra.mxu0 0
        %1408 = vmatprep.subr.bf16.mxu0 0
        %1409 = vmatpush1.bf16.msra.mxu0 0
        %1410 = vmatprep.subr.bf16.mxu0 0
        %1411 = vmatpush1.bf16.msra.mxu0 0
        %1412 = vmatprep.subr.bf16.mxu0 0
        %1413 = vmatpush1.bf16.msra.mxu0 0
        %1414 = vmatprep.subr.bf16.mxu0 0
        %1415 = vmatpush1.bf16.msra.mxu0 0
        %1416 = vmatprep.subr.bf16.mxu0 0
        %1417 = vmatpush1.bf16.msra.mxu0 %v1398
        %1418 = vmatprep.subr.bf16.mxu0 0
        %1419 = vmatpush1.bf16.msra.mxu0 %v1397
        %1420 = vmatprep.subr.bf16.mxu0 0
        %1421 = vmatpush2.bf16.msra.mxu0 0
        %1422 = vmatprep.subr.bf16.mxu0 0
        %1423 = vmatpush2.bf16.msra.mxu0 0
        %1424 = vmatprep.subr.bf16.mxu0 0
        %1425 = vmatpush2.bf16.msra.mxu0 0
        %1426 = vmatprep.subr.bf16.mxu0 0
        %1427 = vmatpush2.bf16.msra.mxu0 0
        %1428 = vmatprep.subr.bf16.mxu0 0
        %1429 = vmatpush2.bf16.msra.mxu0 0
        %1430 = vmatprep.subr.bf16.mxu0 0
        %1431 = vmatpush2.bf16.msra.mxu0 0
        %1432 = vmatprep.subr.bf16.mxu0 0
        %1433 = vmatpush2.bf16.msra.mxu0 0
        %1434 = vmatprep.subr.bf16.mxu0 0
        %1435 = vmatpush2.bf16.msra.mxu0 0
        %1436 = vmatprep.mubr.bf16.mxu0 0
        %1437 = vmatmul.mubr.bf16.gmra.mxu0 %v1402
        %v1438 = vpop.f32.mrf.mxu0
        %v1439 = vadd.f32 %v1387, %v1438
        %v1440 = vpop.f32.mrf.mxu0
        %v1441 = vpop.f32.mrf.mxu0
        %v1442 = vadd.f32 %v1387, %v1441
        %v1443 = vpop.f32.mrf.mxu0
        %1444 = vdwg.mxu0
        %v1445 = vadd.f32 %v1439, %v843
        %v1446 = vadd.f32 %v1442, %v844
        %v1447 = vld [vmem:[%s762] sm:$0x1]
        %v1448 = vld [vmem:[%s765] sm:$0x1]
        %v1449 = vsel %vm871, %v1445, 0.0
        %1450 = vadd.xlane.f32.xlu0 %v1449
        %v1451 = vpop.xlane.xlu0 %1450
        %v1452 = vsel %vm871, %v1446, 0.0
        %1453 = vadd.xlane.f32.xlu0 %v1452
        %v1454 = vpop.xlane.xlu0 %1453
        %v1455 = vrcp.pop 32.0
        %v1456 = vmul.f32 %v1451, %v1455
        %v1457 = vmul.f32 %v1454, %v1455
        %v1458 = vsub.f32 %v1445, %v1456
        %v1459 = vsub.f32 %v1446, %v1457
        %v1460 = vmul.f32 %v1458, %v1458
        %v1461 = vmul.f32 %v1459, %v1459
        %v1462 = vsel %vm871, %v1460, 0.0
        %1463 = vadd.xlane.f32.xlu0 %v1462
        %v1464 = vpop.xlane.xlu0 %1463
        %v1465 = vsel %vm871, %v1461, 0.0
        %1466 = vadd.xlane.f32.xlu0 %v1465
        %v1467 = vpop.xlane.xlu0 %1466
        %v1468 = vmul.f32 %v1464, %v1455
        %v1469 = vmul.f32 %v1467, %v1455
        %v1470 = vadd.f32 %v1468, 1e-12
        %v1471 = vadd.f32 %v1469, 1e-12
        %v1472 = vrsqrt.pop %v1470
        %v1473 = vrsqrt.pop %v1471
        %v1474 = vmul.f32 %v1458, %v1472
        %v1475 = vmul.f32 %v1459, %v1473
        %v1477 = vlaneseq
        %v1478 = vshrl.u32 %v1477, 7
        %v1479 = vsub.s32 0, %v1478
        %v1480 = vrot.slane %v1447, %v1479
        %v1482 = vmul.f32 %v1474, %v1480
        %v1483 = vmul.f32 %v1475, %v1480
        %v1485 = vlaneseq
        %v1486 = vshrl.u32 %v1485, 7
        %v1487 = vsub.s32 0, %v1486
        %v1488 = vrot.slane %v1448, %v1487
        %v1490 = vadd.f32 %v1482, %v1488
        %v1491 = vadd.f32 %v1483, %v1488
        %v1492 = vpack.c.bf16 %v1491, %v1490
        %v1493 = vld [vmem:[%s770] sm:$0xf]
        %v1494 = vld [vmem:[%s770 + $0x4] sm:$0xf]
        %v1495 = vld [vmem:[%s770 + $0x8] sm:$0xf]
        %v1496 = vld [vmem:[%s770 + $0xc] sm:$0xf]
        %v1497 = vld [vmem:[%s773] sm:$0x1]
        %v1499 = vlaneseq
        %v1500 = vshrl.u32 %v1499, 7
        %v1501 = vsub.s32 0, %v1500
        %v1502 = vrot.slane %v1497, %v1501
        %v1508 = vunpack.c.l.b16 %v1493
        %v1509 = vunpack.c.l.b16 %v1494
        %v1510 = vunpack.c.l.b16 %v1495
        %v1511 = vunpack.c.l.b16 %v1496
        %v1512 = vpack.c.b16 %v1509, %v1508
        %v1513 = vpack.c.b16 %v1511, %v1510
        %v1517 = vsel %vm871, %v1492, 0
        %1519 = vmatprep.subr.bf16.mxu0 0
        %1520 = vmatpush1.bf16.msra.mxu0 0
        %1521 = vmatprep.subr.bf16.mxu0 0
        %1522 = vmatpush1.bf16.msra.mxu0 0
        %1523 = vmatprep.subr.bf16.mxu0 0
        %1524 = vmatpush1.bf16.msra.mxu0 0
        %1525 = vmatprep.subr.bf16.mxu0 0
        %1526 = vmatpush1.bf16.msra.mxu0 0
        %1527 = vmatprep.subr.bf16.mxu0 0
        %1528 = vmatpush1.bf16.msra.mxu0 0
        %1529 = vmatprep.subr.bf16.mxu0 0
        %1530 = vmatpush1.bf16.msra.mxu0 0
        %1531 = vmatprep.subr.bf16.mxu0 0
        %1532 = vmatpush1.bf16.msra.mxu0 %v1513
        %1533 = vmatprep.subr.bf16.mxu0 0
        %1534 = vmatpush1.bf16.msra.mxu0 %v1512
        %1535 = vmatprep.subr.bf16.mxu0 0
        %1536 = vmatpush2.bf16.msra.mxu0 0
        %1537 = vmatprep.subr.bf16.mxu0 0
        %1538 = vmatpush2.bf16.msra.mxu0 0
        %1539 = vmatprep.subr.bf16.mxu0 0
        %1540 = vmatpush2.bf16.msra.mxu0 0
        %1541 = vmatprep.subr.bf16.mxu0 0
        %1542 = vmatpush2.bf16.msra.mxu0 0
        %1543 = vmatprep.subr.bf16.mxu0 0
        %1544 = vmatpush2.bf16.msra.mxu0 0
        %1545 = vmatprep.subr.bf16.mxu0 0
        %1546 = vmatpush2.bf16.msra.mxu0 0
        %1547 = vmatprep.subr.bf16.mxu0 0
        %1548 = vmatpush2.bf16.msra.mxu0 0
        %1549 = vmatprep.subr.bf16.mxu0 0
        %1550 = vmatpush2.bf16.msra.mxu0 0
        %1551 = vmatprep.mubr.bf16.mxu0 0
        %1552 = vmatmul.mubr.bf16.gmra.mxu0 %v1517
        %v1553 = vpop.f32.mrf.mxu0
        %v1554 = vadd.f32 %v1502, %v1553
        %v1555 = vpop.f32.mrf.mxu0
        %v1556 = vpop.f32.mrf.mxu0
        %v1557 = vadd.f32 %v1502, %v1556
        %v1558 = vpop.f32.mrf.mxu0
        %1559 = vdwg.mxu0
        %v1560 = vmul.f32 %v1554, 0.5
        %v1561 = vmul.f32 %v1557, 0.5
        %v1562 = vmul.f32 %v1554, 0.70710677
        %v1563 = vmul.f32 %v1557, 0.70710677
        %v1564 = verf.f32.pop %v1562
        %v1565 = verf.f32.pop %v1563
        %v1566 = vadd.f32 %v1564, 1.0
        %v1567 = vadd.f32 %v1565, 1.0
        %v1568 = vmul.f32 %v1560, %v1566
        %v1569 = vmul.f32 %v1561, %v1567
        %v1570 = vpack.c.bf16 %v1569, %v1568
        %v1571 = vld [vmem:[%s778] sm:$0xf]
        %v1572 = vld [vmem:[%s778 + $0x4] sm:$0xf]
        %v1573 = vld [vmem:[%s778 + $0x8] sm:$0xf]
        %v1574 = vld [vmem:[%s778 + $0xc] sm:$0xf]
        %v1575 = vld [vmem:[%s778 + $0x10] sm:$0xf]
        %v1576 = vld [vmem:[%s778 + $0x14] sm:$0xf]
        %v1577 = vld [vmem:[%s778 + $0x18] sm:$0xf]
        %v1578 = vld [vmem:[%s778 + $0x1c] sm:$0xf]
        %v1579 = vld [vmem:[%s781] sm:$0x1]
        %v1581 = vlaneseq
        %v1582 = vshrl.u32 %v1581, 7
        %v1583 = vsub.s32 0, %v1582
        %v1584 = vrot.slane %v1579, %v1583
        %v1594 = vunpack.c.l.b16 %v1571
        %v1595 = vunpack.c.l.b16 %v1572
        %v1596 = vunpack.c.l.b16 %v1573
        %v1597 = vunpack.c.l.b16 %v1574
        %v1598 = vunpack.c.l.b16 %v1575
        %v1599 = vunpack.c.l.b16 %v1576
        %v1600 = vunpack.c.l.b16 %v1577
        %v1601 = vunpack.c.l.b16 %v1578
        %v1602 = vpack.c.b16 %v1595, %v1594
        %v1603 = vpack.c.b16 %v1597, %v1596
        %v1604 = vpack.c.b16 %v1599, %v1598
        %v1605 = vpack.c.b16 %v1601, %v1600
        %vm1610 = vcmask 523264
        %v1612 = vsel %vm1610, %v1570, 0
        %1614 = vmatprep.subr.bf16.mxu0 0
        %1615 = vmatpush1.bf16.msra.mxu0 0
        %1616 = vmatprep.subr.bf16.mxu0 0
        %1617 = vmatpush1.bf16.msra.mxu0 0
        %1618 = vmatprep.subr.bf16.mxu0 0
        %1619 = vmatpush1.bf16.msra.mxu0 0
        %1620 = vmatprep.subr.bf16.mxu0 0
        %1621 = vmatpush1.bf16.msra.mxu0 0
        %1622 = vmatprep.subr.bf16.mxu0 0
        %1623 = vmatpush1.bf16.msra.mxu0 %v1605
        %1624 = vmatprep.subr.bf16.mxu0 0
        %1625 = vmatpush1.bf16.msra.mxu0 %v1604
        %1626 = vmatprep.subr.bf16.mxu0 0
        %1627 = vmatpush1.bf16.msra.mxu0 %v1603
        %1628 = vmatprep.subr.bf16.mxu0 0
        %1629 = vmatpush1.bf16.msra.mxu0 %v1602
        %1630 = vmatprep.subr.bf16.mxu0 0
        %1631 = vmatpush2.bf16.msra.mxu0 0
        %1632 = vmatprep.subr.bf16.mxu0 0
        %1633 = vmatpush2.bf16.msra.mxu0 0
        %1634 = vmatprep.subr.bf16.mxu0 0
        %1635 = vmatpush2.bf16.msra.mxu0 0
        %1636 = vmatprep.subr.bf16.mxu0 0
        %1637 = vmatpush2.bf16.msra.mxu0 0
        %1638 = vmatprep.subr.bf16.mxu0 0
        %1639 = vmatpush2.bf16.msra.mxu0 0
        %1640 = vmatprep.subr.bf16.mxu0 0
        %1641 = vmatpush2.bf16.msra.mxu0 0
        %1642 = vmatprep.subr.bf16.mxu0 0
        %1643 = vmatpush2.bf16.msra.mxu0 0
        %1644 = vmatprep.subr.bf16.mxu0 0
        %1645 = vmatpush2.bf16.msra.mxu0 0
        %1646 = vmatprep.mubr.bf16.mxu0 0
        %1647 = vmatmul.mubr.bf16.gmra.mxu0 %v1612
        %v1648 = vpop.f32.mrf.mxu0
        %v1649 = vadd.f32 %v1584, %v1648
        %v1650 = vpop.f32.mrf.mxu0
        %v1651 = vpop.f32.mrf.mxu0
        %v1652 = vadd.f32 %v1584, %v1651
        %v1653 = vpop.f32.mrf.mxu0
        %1654 = vdwg.mxu0
        %v1655 = vadd.f32 %v1649, %v1490
        %v1656 = vadd.f32 %v1652, %v1491
        %v1657 = vld [vmem:[%s784] sm:$0x1]
        %v1658 = vld [vmem:[%s787] sm:$0x1]
        %v1659 = vsel %vm871, %v1655, 0.0
        %1660 = vadd.xlane.f32.xlu0 %v1659
        %v1661 = vpop.xlane.xlu0 %1660
        %v1662 = vsel %vm871, %v1656, 0.0
        %1663 = vadd.xlane.f32.xlu0 %v1662
        %v1664 = vpop.xlane.xlu0 %1663
        %v1665 = vmul.f32 %v1661, %v1455
        %v1666 = vmul.f32 %v1664, %v1455
        %v1667 = vsub.f32 %v1655, %v1665
        %v1668 = vsub.f32 %v1656, %v1666
        %v1669 = vmul.f32 %v1667, %v1667
        %v1670 = vmul.f32 %v1668, %v1668
        %v1671 = vsel %vm871, %v1669, 0.0
        %1672 = vadd.xlane.f32.xlu0 %v1671
        %v1673 = vpop.xlane.xlu0 %1672
        %v1674 = vsel %vm871, %v1670, 0.0
        %1675 = vadd.xlane.f32.xlu0 %v1674
        %v1676 = vpop.xlane.xlu0 %1675
        %v1677 = vmul.f32 %v1673, %v1455
        %v1678 = vmul.f32 %v1676, %v1455
        %v1679 = vadd.f32 %v1677, 1e-12
        %v1680 = vadd.f32 %v1678, 1e-12
        %v1681 = vrsqrt.pop %v1679
        %v1682 = vrsqrt.pop %v1680
        %v1683 = vmul.f32 %v1667, %v1681
        %v1684 = vmul.f32 %v1668, %v1682
        %v1686 = vlaneseq
        %v1687 = vshrl.u32 %v1686, 7
        %v1688 = vsub.s32 0, %v1687
        %v1689 = vrot.slane %v1657, %v1688
        %v1691 = vmul.f32 %v1683, %v1689
        %v1692 = vmul.f32 %v1684, %v1689
        %v1694 = vlaneseq
        %v1695 = vshrl.u32 %v1694, 7
        %v1696 = vsub.s32 0, %v1695
        %v1697 = vrot.slane %v1658, %v1696
        %v1699 = vadd.f32 %v1691, %v1697
        %v1700 = vadd.f32 %v1692, %v1697
        %1701 = vst.msk [vmem:[#allocation2] sm:$0xff] %vm871, %v1699
        %1702 = vst.msk [vmem:[#allocation2 + $0x8] sm:$0xff] %vm871, %v1700
        %p1703 = scmp.eq.s32.totalorder %s32, 1
        // Predicated region
        $region105: #{bert_classifier_forward.1} parent=99 // pred_check
          %p1704 = pneg %p1703
        $region106: #{bert_classifier_forward.1} parent=99 // pred_check_branch
          %1706 = sbr.rel (%p1704) target = $region108
        $region107: #{bert_classifier_forward.1} parent=99 // pred_region
          %v1707 = vpack.c.bf16 %v1699, %v1699
          %v1708 = vpack.c.bf16 %v1700, %v1700
          %v1709 = vld [vmem:[%s16] sm:$0xf]
          %v1710 = vld [vmem:[%s16 + $0x4] sm:$0xf]
          %v1711 = vld [vmem:[%s16 + $0x8] sm:$0xf]
          %v1712 = vld [vmem:[%s16 + $0xc] sm:$0xf]
          %v1713 = vld [vmem:[%s17] sm:$0x1]
          %v1715 = vlaneseq
          %v1716 = vshrl.u32 %v1715, 7
          %v1717 = vsub.s32 0, %v1716
          %v1718 = vrot.slane %v1713, %v1717
          %v1722 = vunpack.c.l.b16 %v1707
          %v1723 = vunpack.c.l.b16 %v1708
          %v1724 = vrot.slane %v1723, 7
          %vm1725 = vcmask 1041409
          %v1726 = vsel %vm1725, %v1724, %v1722
          %v1727 = vpack.c.b16 %v1726, %v1726
          %v1732 = vunpack.c.l.b16 %v1709
          %v1733 = vunpack.c.l.b16 %v1710
          %v1734 = vunpack.c.l.b16 %v1711
          %v1735 = vunpack.c.l.b16 %v1712
          %v1736 = vpack.c.b16 %v1733, %v1732
          %v1737 = vpack.c.b16 %v1735, %v1734
          %v1741 = vsel %vm871, %v1727, 0
          %1743 = vmatprep.subr.bf16.mxu0 0
          %1744 = vmatpush1.bf16.msra.mxu0 0
          %1745 = vmatprep.subr.bf16.mxu0 0
          %1746 = vmatpush1.bf16.msra.mxu0 0
          %1747 = vmatprep.subr.bf16.mxu0 0
          %1748 = vmatpush1.bf16.msra.mxu0 0
          %1749 = vmatprep.subr.bf16.mxu0 0
          %1750 = vmatpush1.bf16.msra.mxu0 0
          %1751 = vmatprep.subr.bf16.mxu0 0
          %1752 = vmatpush1.bf16.msra.mxu0 0
          %1753 = vmatprep.subr.bf16.mxu0 0
          %1754 = vmatpush1.bf16.msra.mxu0 0
          %1755 = vmatprep.subr.bf16.mxu0 0
          %1756 = vmatpush1.bf16.msra.mxu0 %v1737
          %1757 = vmatprep.subr.bf16.mxu0 0
          %1758 = vmatpush1.bf16.msra.mxu0 %v1736
          %1759 = vmatprep.subr.bf16.mxu0 0
          %1760 = vmatpush2.bf16.msra.mxu0 0
          %1761 = vmatprep.subr.bf16.mxu0 0
          %1762 = vmatpush2.bf16.msra.mxu0 0
          %1763 = vmatprep.subr.bf16.mxu0 0
          %1764 = vmatpush2.bf16.msra.mxu0 0
          %1765 = vmatprep.subr.bf16.mxu0 0
          %1766 = vmatpush2.bf16.msra.mxu0 0
          %1767 = vmatprep.subr.bf16.mxu0 0
          %1768 = vmatpush2.bf16.msra.mxu0 0
          %1769 = vmatprep.subr.bf16.mxu0 0
          %1770 = vmatpush2.bf16.msra.mxu0 0
          %1771 = vmatprep.subr.bf16.mxu0 0
          %1772 = vmatpush2.bf16.msra.mxu0 0
          %1773 = vmatprep.subr.bf16.mxu0 0
          %1774 = vmatpush2.bf16.msra.mxu0 0
          %1775 = vmatprep.mubr.bf16.mxu0 0
          %1776 = vmatmul.mubr.bf16.gmra.mxu0 %v1741
          %v1777 = vpop.f32.mrf.mxu0
          %v1778 = vadd.f32 %v1718, %v1777
          %v1779 = vpop.f32.mrf.mxu0
          %v1780 = vpop.f32.mrf.mxu0
          %v1781 = vpop.f32.mrf.mxu0
          %1782 = vdwg.mxu0
          %v1783 = vtanh.pop %v1778
          %v1784 = vpack.c.bf16 %v1783, %v1783
          %v1785 = vld [vmem:[%s18] sm:$0xf]
          %v1786 = vld [vmem:[%s18 + $0x4] sm:$0xf]
          %v1787 = vld [vmem:[%s18 + $0x8] sm:$0xf]
          %v1788 = vld [vmem:[%s18 + $0xc] sm:$0xf]
          %v1789 = vld [vmem:[%s19] sm:$0x1]
          %v1791 = vlaneseq
          %v1792 = vshrl.u32 %v1791, 7
          %v1793 = vsub.s32 0, %v1792
          %v1794 = vrot.slane %v1789, %v1793
          %v1800 = vunpack.c.l.b16 %v1785
          %v1801 = vunpack.c.l.b16 %v1786
          %v1802 = vunpack.c.l.b16 %v1787
          %v1803 = vunpack.c.l.b16 %v1788
          %v1804 = vpack.c.b16 %v1801, %v1800
          %v1805 = vpack.c.b16 %v1803, %v1802
          %v1809 = vsel %vm871, %v1784, 0
          %1811 = vmatprep.subr.bf16.mxu0 0
          %1812 = vmatpush1.bf16.msra.mxu0 0
          %1813 = vmatprep.subr.bf16.mxu0 0
          %1814 = vmatpush1.bf16.msra.mxu0 0
          %1815 = vmatprep.subr.bf16.mxu0 0
          %1816 = vmatpush1.bf16.msra.mxu0 0
          %1817 = vmatprep.subr.bf16.mxu0 0
          %1818 = vmatpush1.bf16.msra.mxu0 0
          %1819 = vmatprep.subr.bf16.mxu0 0
          %1820 = vmatpush1.bf16.msra.mxu0 0
          %1821 = vmatprep.subr.bf16.mxu0 0
          %1822 = vmatpush1.bf16.msra.mxu0 0
          %1823 = vmatprep.subr.bf16.mxu0 0
          %1824 = vmatpush1.bf16.msra.mxu0 %v1805
          %1825 = vmatprep.subr.bf16.mxu0 0
          %1826 = vmatpush1.bf16.msra.mxu0 %v1804
          %1827 = vmatprep.subr.bf16.mxu0 0
          %1828 = vmatpush2.bf16.msra.mxu0 0
          %1829 = vmatprep.subr.bf16.mxu0 0
          %1830 = vmatpush2.bf16.msra.mxu0 0
          %1831 = vmatprep.subr.bf16.mxu0 0
          %1832 = vmatpush2.bf16.msra.mxu0 0
          %1833 = vmatprep.subr.bf16.mxu0 0
          %1834 = vmatpush2.bf16.msra.mxu0 0
          %1835 = vmatprep.subr.bf16.mxu0 0
          %1836 = vmatpush2.bf16.msra.mxu0 0
          %1837 = vmatprep.subr.bf16.mxu0 0
          %1838 = vmatpush2.bf16.msra.mxu0 0
          %1839 = vmatprep.subr.bf16.mxu0 0
          %1840 = vmatpush2.bf16.msra.mxu0 0
          %1841 = vmatprep.subr.bf16.mxu0 0
          %1842 = vmatpush2.bf16.msra.mxu0 0
          %1843 = vmatprep.mubr.bf16.mxu0 0
          %1844 = vmatmul.mubr.bf16.gmra.mxu0 %v1809
          %v1845 = vpop.f32.mrf.mxu0
          %v1846 = vadd.f32 %v1794, %v1845
          %v1847 = vpop.f32.mrf.mxu0
          %v1848 = vpop.f32.mrf.mxu0
          %v1849 = vpop.f32.mrf.mxu0
          %1850 = vdwg.mxu0
          %1851 = vst [vmem:[#allocation3] sm:$0x3] %v1846
        $region108: #{bert_classifier_forward.1} parent=99 // pred_fallthru
          _
        // Predicated region
        $region109: #{bert_classifier_forward.1} parent=99 // pred_check
          %p1852 = pneg %p525
        $region110: #{bert_classifier_forward.1} parent=99 // pred_check_branch
          %1854 = sbr.rel (%p1852) target = $region112
        $region111: #{bert_classifier_forward.1} parent=99 // pred_region
          %s1856 = ssub.s32 32, 32
          %1857 = vsyncadd [#allocation4], %s1856
          %s1859 = sshll.u32 [#allocation3], 4
          %s1860 = int_to_ptr.vmem [resolvable:$true] %s1859
          %1862 = dma.vmem_to_hbm [thread:$0]  %s1860, 32, %s20, [#allocation4]
        $region112: #{bert_classifier_forward.1} parent=99 // pred_fallthru
          _
        // Predicated region
        $region113: #{bert_classifier_forward.1} parent=99 // pred_check
          %p1863 = pneg %p525
        $region114: #{bert_classifier_forward.1} parent=99 // pred_check_branch
          %1865 = sbr.rel (%p1863) target = $region116
        $region115: #{bert_classifier_forward.1} parent=99 // pred_region
          %1866 = dma.done [#allocation4], 32
        $region116: #{bert_classifier_forward.1} parent=99 // pred_fallthru
          _
      $region100: #{bert_classifier_forward.1} parent=5 // pred_fallthru
        _
      %p1867 = scmp.le.s32.totalorder 2, %s27
      // Predicated region
      $region117: #{bert_classifier_forward.1} parent=5 // pred_check
        %p1868 = pneg %p1867
      $region118: #{bert_classifier_forward.1} parent=5 // pred_check_branch
        %1870 = sbr.rel (%p1868) target = $region120
      $region119: #{bert_classifier_forward.1} parent=5 // pred_region
        %s1871 = ssub.s32 %s27, 2
      $region120: #{bert_classifier_forward.1} parent=5 // pred_fallthru
        _
    $region6: #{bert_classifier_forward.1} parent=1 // loop_footer
      %s31 = sadd.s32 1, %s27
    $region7: #{bert_classifier_forward.1} parent=1 // loop_footer_branch
      %26 = sbr.rel target = $region3
    $region8: #{bert_classifier_forward.1} parent=1 // loop_exit
      _
    %1872 = vsyncpa [#allocation4], 1
    %s1873 = scalar_lea.sflag [#allocation4], 1
    %1874 = vsyncpa %s1873, 1

</llo_original>
